<compile_context>
chip_gen: v5e
topology: v5e:2x2
jax: 0.10.0
libtpu: 0.0.40
codegen_flags: <defaults>
</compile_context>

<pallas_src>
import math

import jax
import jax.numpy as jnp
from jax.experimental import pallas as pl
from jax.experimental.pallas import tpu as pltpu

# ---------------- model dimensions (small, synthetic) ----------------
B = 2        # batch
S = 8        # sequence length (number of points)
D = 32       # model dim
H = 4        # attention heads
DK = D // H  # per-head dim
DFF = 64     # feed-forward hidden dim
N_LAYERS = 2
EPS = 1e-6   # LayerNorm eps (annotated transformer divides by std + eps)


def _layer_norm(v, gamma, beta):
    # matches annotated-transformer LayerNorm:
    #   a_2 * (x - mean) / (std + eps) + b_2, std unbiased (n-1) over last dim
    mu = jnp.mean(v, axis=-1, keepdims=True)
    var = jnp.sum((v - mu) ** 2, axis=-1, keepdims=True) * (1.0 / (v.shape[-1] - 1))
    inv = pl.reciprocal(jnp.sqrt(var) + EPS, approx=True)   # EUP slot, off VALU path
    return gamma * (v - mu) * inv + beta


def encoder_kernel(
    x_ref, mask_ref,
    wqkv_ref, bqkv_ref, wo_ref, wf1_ref, bf1_ref, wf2_ref, small_ref,
    o_ref,
):
    x = x_ref[0].astype(jnp.float32)            # (S, D)
    mask = mask_ref[0]                          # (S, S)

    # Additive attention bias, computed ONCE per batch row (hoisted out of the
    # layer loop and the head axis).  masked_fill(mask==0, -1e9) equivalent.
    bias = jnp.where(mask == 0, jnp.float32(-1e9), jnp.float32(0.0))   # (S, S)

    n_layers = wqkv_ref.shape[0]
    for l in range(n_layers):                   # layers fused: x stays in VMEM
        small = small_ref[l]                    # (6, D): g1, b1, g2, b2, bo, bf2
        g1, bt1 = small[0:1], small[1:2]
        g2, bt2 = small[2:3], small[3:4]
        bo, bf2 = small[4:5], small[5:6]

        # ---- sublayer 1: x + SelfAttn(LayerNorm(x)) ----
        xn = _layer_norm(x, g1, bt1)            # (S, D)

        # fused QKV projection; 1/sqrt(dk) already folded into Wq/bq
        qkv = jnp.dot(xn, wqkv_ref[l],
                      preferred_element_type=jnp.float32) + bqkv_ref[l]   # (S, 3D)

        # split heads -> (3H, S, DK), then batched attention over the head axis
        heads = jnp.stack(
            [qkv[:, i * DK:(i + 1) * DK] for i in range(3 * H)], axis=0)
        q = heads[:H]                           # (H, S, DK) (pre-scaled)
        k = heads[H:2 * H]
        v = heads[2 * H:]

        scores = jnp.einsum('hqd,hkd->hqk', q, k,
                            preferred_element_type=jnp.float32)          # (H, S, S)
        scores = scores + bias                  # broadcast over heads
        scores = scores - jnp.max(scores, axis=-1, keepdims=True)
        p = jnp.exp(scores)
        p = p * pl.reciprocal(jnp.sum(p, axis=-1, keepdims=True), approx=True)

        ctx = jnp.einsum('hqk,hkd->hqd', p, v,
                         preferred_element_type=jnp.float32)             # (H, S, DK)
        ctx = jnp.concatenate([ctx[h] for h in range(H)], axis=-1)        # (S, D)

        attn_out = jnp.dot(ctx, wo_ref[l],
                           preferred_element_type=jnp.float32) + bo
        x = x + attn_out

        # ---- sublayer 2: x + FFN(LayerNorm(x)) ----
        xn2 = _layer_norm(x, g2, bt2)
        h1 = jnp.dot(xn2, wf1_ref[l],
                     preferred_element_type=jnp.float32) + bf1_ref[l]
        h1 = jnp.maximum(h1, 0.0)               # ReLU
        ff = jnp.dot(h1, wf2_ref[l],
                     preferred_element_type=jnp.float32) + bf2
        x = x + ff

    o_ref[0] = x.astype(o_ref.dtype)


def _resident_spec(shape):
    # Whole array as one block, same block index every grid step -> stays
    # resident in VMEM across the (parallel) batch grid.
    n = len(shape)
    return pl.BlockSpec(shape, lambda b, _n=n: (0,) * _n)


def encoder_forward(x, mask, packed):
    """Full N-layer encoder forward in a single pallas_call.

    x: (B, S, D) f32, mask: (B, S, S) f32 (0 => masked).
    """
    Bq, Sq, Dq = x.shape
    weight_args = [
        packed["w_qkv"], packed["b_qkv"], packed["w_o"],
        packed["w_f1"], packed["b_f1"], packed["w_f2"], packed["small"],
    ]
    in_specs = [
        pl.BlockSpec((1, Sq, Dq), lambda b: (b, 0, 0)),   # x
        pl.BlockSpec((1, Sq, Sq), lambda b: (b, 0, 0)),   # mask
    ] + [_resident_spec(w.shape) for w in weight_args]

    return pl.pallas_call(
        encoder_kernel,
        out_shape=jax.ShapeDtypeStruct((Bq, Sq, Dq), x.dtype),
        grid_spec=pltpu.PrefetchScalarGridSpec(
            num_scalar_prefetch=0,
            grid=(Bq,),
            in_specs=in_specs,
            out_specs=pl.BlockSpec((1, Sq, Dq), lambda b: (b, 0, 0)),
        ),
        compiler_params=pltpu.CompilerParams(
            dimension_semantics=("parallel",)),
    )(x, mask, *weight_args)


def init_layer_params(key):
    # Deterministic synthetic init. PyTorch Linear stores (out,in); we store
    # weights transposed as (in,out) so the kernel computes x @ W + b.
    ks = jax.random.split(key, 6)
    scale = 0.1

    def w(k, shape):
        return (scale * jax.random.normal(k, shape)).astype(jnp.float32)

    return {
        "wq": w(ks[0], (D, D)), "bq": jnp.zeros((1, D), jnp.float32),
        "wk": w(ks[1], (D, D)), "bk": jnp.zeros((1, D), jnp.float32),
        "wv": w(ks[2], (D, D)), "bv": jnp.zeros((1, D), jnp.float32),
        "wo": w(ks[3], (D, D)), "bo": jnp.zeros((1, D), jnp.float32),
        "g1": jnp.ones((1, D), jnp.float32), "bt1": jnp.zeros((1, D), jnp.float32),
        "w1": w(ks[4], (D, DFF)), "bf1": jnp.zeros((1, DFF), jnp.float32),
        "w2": w(ks[5], (DFF, D)), "bf2": jnp.zeros((1, D), jnp.float32),
        "g2": jnp.ones((1, D), jnp.float32), "bt2": jnp.zeros((1, D), jnp.float32),
    }


def pack_layer_params(layer_params):
    """Stack per-layer params with a leading layer dim, fuse QKV, fold scale.

    Returns 7 arrays instead of 18 per-layer tensors.
    """
    inv_sqrt_dk = 1.0 / math.sqrt(DK)
    w_qkv, b_qkv, w_o, w_f1, b_f1, w_f2, small = [], [], [], [], [], [], []
    for p in layer_params:
        wq = p["wq"] * inv_sqrt_dk                       # fold 1/sqrt(dk) into Q
        bq = p["bq"] * inv_sqrt_dk
        w_qkv.append(jnp.concatenate([wq, p["wk"], p["wv"]], axis=1))   # (D, 3D)
        b_qkv.append(jnp.concatenate([bq, p["bk"], p["bv"]], axis=1))   # (1, 3D)
        w_o.append(p["wo"])
        w_f1.append(p["w1"])
        b_f1.append(p["bf1"])
        w_f2.append(p["w2"])
        small.append(jnp.concatenate(
            [p["g1"], p["bt1"], p["g2"], p["bt2"], p["bo"], p["bf2"]], axis=0))  # (6, D)

    stack = lambda xs: jnp.stack(xs, axis=0)
    return dict(
        w_qkv=stack(w_qkv),   # (L, D, 3D)
        b_qkv=stack(b_qkv),   # (L, 1, 3D)
        w_o=stack(w_o),       # (L, D, D)
        w_f1=stack(w_f1),     # (L, D, DFF)
        b_f1=stack(b_f1),     # (L, 1, DFF)
        w_f2=stack(w_f2),     # (L, DFF, D)
        small=stack(small),   # (L, 6, D)
    )


if __name__ == "__main__":
    key = jax.random.PRNGKey(0)
    kx, kp = jax.random.split(key)

    x = jax.random.normal(kx, (B, S, D), dtype=jnp.float32)
    mask = jnp.ones((B, S, S), dtype=jnp.float32)   # all-visible mask

    # clones(layer, N): deep copies => identical initial parameters per layer.
    base = init_layer_params(kp)
    layer_params = [base for _ in range(N_LAYERS)]
    packed = pack_layer_params(layer_params)

    out = encoder_forward(x, mask, packed)
    jax.block_until_ready(out)
    assert out.shape == (B, S, D)
    assert jnp.all(jnp.isfinite(out))
    print("KERNEL_OK")
</pallas_src>

<mosaic_0001>
module attributes {stable_mosaic.version = 11 : i64} {
  func.func @encoder_kernel(%arg0: i32, %arg1: memref<1x8x32xf32, #tpu.memory_space<vmem>>, %arg2: memref<1x8x8xf32, #tpu.memory_space<vmem>>, %arg3: memref<2x32x96xf32, #tpu.memory_space<vmem>>, %arg4: memref<2x1x96xf32, #tpu.memory_space<vmem>>, %arg5: memref<2x32x32xf32, #tpu.memory_space<vmem>>, %arg6: memref<2x32x64xf32, #tpu.memory_space<vmem>>, %arg7: memref<2x1x64xf32, #tpu.memory_space<vmem>>, %arg8: memref<2x64x32xf32, #tpu.memory_space<vmem>>, %arg9: memref<2x6x32xf32, #tpu.memory_space<vmem>>, %arg10: memref<1x8x32xf32, #tpu.memory_space<vmem>>) attributes {dimension_semantics = [#tpu.dimension_semantics<parallel>], iteration_bounds = array<i64: 2>, scalar_prefetch = 0 : i64, scratch_operands = 0 : i64, tpu.core_type = #tpu.core_type<tc>, window_params = [{transform_indices = @transform_0, window_bounds = array<i64: 1, 8, 32>}, {transform_indices = @transform_1, window_bounds = array<i64: 1, 8, 8>}, {pipeline_mode = #tpu.pipeline_mode<synchronous>, transform_indices = @transform_2, window_bounds = array<i64: 2, 32, 96>}, {pipeline_mode = #tpu.pipeline_mode<synchronous>, transform_indices = @transform_3, window_bounds = array<i64: 2, 1, 96>}, {pipeline_mode = #tpu.pipeline_mode<synchronous>, transform_indices = @transform_4, window_bounds = array<i64: 2, 32, 32>}, {pipeline_mode = #tpu.pipeline_mode<synchronous>, transform_indices = @transform_5, window_bounds = array<i64: 2, 32, 64>}, {pipeline_mode = #tpu.pipeline_mode<synchronous>, transform_indices = @transform_6, window_bounds = array<i64: 2, 1, 64>}, {pipeline_mode = #tpu.pipeline_mode<synchronous>, transform_indices = @transform_7, window_bounds = array<i64: 2, 64, 32>}, {pipeline_mode = #tpu.pipeline_mode<synchronous>, transform_indices = @transform_8, window_bounds = array<i64: 2, 6, 32>}, {transform_indices = @transform_9, window_bounds = array<i64: 1, 8, 32>}]} {
    %c0 = arith.constant 0 : index
    %c0_0 = arith.constant 0 : index
    %c0_1 = arith.constant 0 : index
    %0 = vector.load %arg1[%c0, %c0_0, %c0_1] : memref<1x8x32xf32, #tpu.memory_space<vmem>>, vector<1x8x32xf32>
    %1 = vector.shape_cast %0 : vector<1x8x32xf32> to vector<8x32xf32>
    %c0_2 = arith.constant 0 : index
    %c0_3 = arith.constant 0 : index
    %c0_4 = arith.constant 0 : index
    %2 = vector.load %arg2[%c0_2, %c0_3, %c0_4] : memref<1x8x8xf32, #tpu.memory_space<vmem>>, vector<1x8x8xf32>
    %3 = vector.shape_cast %2 : vector<1x8x8xf32> to vector<8x8xf32>
    %cst = arith.constant 0.000000e+00 : f32
    %4 = vector.broadcast %cst : f32 to vector<8x8xf32>
    %5 = arith.cmpf oeq, %3, %4 : vector<8x8xf32>
    %cst_5 = arith.constant -1.000000e+09 : f32
    %cst_6 = arith.constant 0.000000e+00 : f32
    %6 = vector.broadcast %cst_5 : f32 to vector<8x8xf32>
    %7 = vector.broadcast %cst_6 : f32 to vector<8x8xf32>
    %8 = arith.select %5, %6, %7 : vector<8x8xi1>, vector<8x8xf32>
    %c0_7 = arith.constant 0 : index
    %c0_8 = arith.constant 0 : index
    %c0_9 = arith.constant 0 : index
    %9 = vector.load %arg9[%c0_7, %c0_8, %c0_9] : memref<2x6x32xf32, #tpu.memory_space<vmem>>, vector<1x6x32xf32>
    %10 = vector.shape_cast %9 : vector<1x6x32xf32> to vector<6x32xf32>
    %11 = vector.extract_strided_slice %10 {offsets = [0, 0], sizes = [1, 32], strides = [1, 1]} : vector<6x32xf32> to vector<1x32xf32>
    %12 = vector.extract_strided_slice %10 {offsets = [1, 0], sizes = [1, 32], strides = [1, 1]} : vector<6x32xf32> to vector<1x32xf32>
    %13 = vector.extract_strided_slice %10 {offsets = [2, 0], sizes = [1, 32], strides = [1, 1]} : vector<6x32xf32> to vector<1x32xf32>
    %14 = vector.extract_strided_slice %10 {offsets = [3, 0], sizes = [1, 32], strides = [1, 1]} : vector<6x32xf32> to vector<1x32xf32>
    %15 = vector.extract_strided_slice %10 {offsets = [4, 0], sizes = [1, 32], strides = [1, 1]} : vector<6x32xf32> to vector<1x32xf32>
    %16 = vector.extract_strided_slice %10 {offsets = [5, 0], sizes = [1, 32], strides = [1, 1]} : vector<6x32xf32> to vector<1x32xf32>
    %cst_10 = arith.constant dense<0.000000e+00> : vector<8xf32>
    %17 = vector.multi_reduction <add>, %1, %cst_10 [1] : vector<8x32xf32> to vector<8xf32>
    %18 = vector.shape_cast %17 : vector<8xf32> to vector<8x1xf32>
    %cst_11 = arith.constant 3.200000e+01 : f32
    %19 = vector.broadcast %cst_11 : f32 to vector<8x1xf32>
    %20 = arith.divf %18, %19 : vector<8x1xf32>
    %21 = vector.broadcast %20 : vector<8x1xf32> to vector<8x32xf32>
    %22 = arith.subf %1, %21 : vector<8x32xf32>
    %23 = arith.mulf %22, %22 : vector<8x32xf32>
    %cst_12 = arith.constant dense<0.000000e+00> : vector<8xf32>
    %24 = vector.multi_reduction <add>, %23, %cst_12 [1] : vector<8x32xf32> to vector<8xf32>
    %25 = vector.shape_cast %24 : vector<8xf32> to vector<8x1xf32>
    %cst_13 = arith.constant 0.0322580636 : f32
    %26 = vector.broadcast %cst_13 : f32 to vector<8x1xf32>
    %27 = arith.mulf %25, %26 : vector<8x1xf32>
    %28 = math.sqrt %27 : vector<8x1xf32>
    %cst_14 = arith.constant 9.99999997E-7 : f32
    %29 = vector.broadcast %cst_14 : f32 to vector<8x1xf32>
    %30 = arith.addf %28, %29 : vector<8x1xf32>
    %31 = tpu.reciprocal %30 {approx = true} : vector<8x1xf32> -> vector<8x1xf32>
    %32 = vector.broadcast %20 : vector<8x1xf32> to vector<8x32xf32>
    %33 = arith.subf %1, %32 : vector<8x32xf32>
    %34 = vector.broadcast %11 : vector<1x32xf32> to vector<8x32xf32>
    %35 = arith.mulf %34, %33 : vector<8x32xf32>
    %36 = vector.broadcast %31 : vector<8x1xf32> to vector<8x32xf32>
    %37 = arith.mulf %35, %36 : vector<8x32xf32>
    %38 = vector.broadcast %12 : vector<1x32xf32> to vector<8x32xf32>
    %39 = arith.addf %37, %38 : vector<8x32xf32>
    %c0_15 = arith.constant 0 : index
    %c0_16 = arith.constant 0 : index
    %c0_17 = arith.constant 0 : index
    %40 = vector.load %arg3[%c0_15, %c0_16, %c0_17] : memref<2x32x96xf32, #tpu.memory_space<vmem>>, vector<1x32x96xf32>
    %41 = vector.shape_cast %40 : vector<1x32x96xf32> to vector<32x96xf32>
    %cst_18 = arith.constant dense<0.000000e+00> : vector<8x96xf32>
    %42 = tpu.matmul %39, %41, %cst_18 {dimension_numbers = #tpu.dot_dimension_numbers<[1], [0], [0], [1], [0, 0, 1, 1], [], []>} : vector<8x32xf32>, vector<32x96xf32>, vector<8x96xf32> -> vector<8x96xf32>
    %c0_19 = arith.constant 0 : index
    %c0_20 = arith.constant 0 : index
    %c0_21 = arith.constant 0 : index
    %43 = vector.load %arg4[%c0_19, %c0_20, %c0_21] : memref<2x1x96xf32, #tpu.memory_space<vmem>>, vector<1x1x96xf32>
    %44 = vector.shape_cast %43 : vector<1x1x96xf32> to vector<1x96xf32>
    %45 = vector.broadcast %44 : vector<1x96xf32> to vector<8x96xf32>
    %46 = arith.addf %42, %45 : vector<8x96xf32>
    %47 = vector.extract_strided_slice %46 {offsets = [0, 0], sizes = [8, 8], strides = [1, 1]} : vector<8x96xf32> to vector<8x8xf32>
    %48 = vector.extract_strided_slice %46 {offsets = [0, 8], sizes = [8, 8], strides = [1, 1]} : vector<8x96xf32> to vector<8x8xf32>
    %49 = vector.extract_strided_slice %46 {offsets = [0, 16], sizes = [8, 8], strides = [1, 1]} : vector<8x96xf32> to vector<8x8xf32>
    %50 = vector.extract_strided_slice %46 {offsets = [0, 24], sizes = [8, 8], strides = [1, 1]} : vector<8x96xf32> to vector<8x8xf32>
    %51 = vector.extract_strided_slice %46 {offsets = [0, 32], sizes = [8, 8], strides = [1, 1]} : vector<8x96xf32> to vector<8x8xf32>
    %52 = vector.extract_strided_slice %46 {offsets = [0, 40], sizes = [8, 8], strides = [1, 1]} : vector<8x96xf32> to vector<8x8xf32>
    %53 = vector.extract_strided_slice %46 {offsets = [0, 48], sizes = [8, 8], strides = [1, 1]} : vector<8x96xf32> to vector<8x8xf32>
    %54 = vector.extract_strided_slice %46 {offsets = [0, 56], sizes = [8, 8], strides = [1, 1]} : vector<8x96xf32> to vector<8x8xf32>
    %55 = vector.extract_strided_slice %46 {offsets = [0, 64], sizes = [8, 8], strides = [1, 1]} : vector<8x96xf32> to vector<8x8xf32>
    %56 = vector.extract_strided_slice %46 {offsets = [0, 72], sizes = [8, 8], strides = [1, 1]} : vector<8x96xf32> to vector<8x8xf32>
    %57 = vector.extract_strided_slice %46 {offsets = [0, 80], sizes = [8, 8], strides = [1, 1]} : vector<8x96xf32> to vector<8x8xf32>
    %58 = vector.extract_strided_slice %46 {offsets = [0, 88], sizes = [8, 8], strides = [1, 1]} : vector<8x96xf32> to vector<8x8xf32>
    %59 = vector.shape_cast %47 : vector<8x8xf32> to vector<1x8x8xf32>
    %60 = vector.shape_cast %48 : vector<8x8xf32> to vector<1x8x8xf32>
    %61 = vector.shape_cast %49 : vector<8x8xf32> to vector<1x8x8xf32>
    %62 = vector.shape_cast %50 : vector<8x8xf32> to vector<1x8x8xf32>
    %63 = vector.shape_cast %51 : vector<8x8xf32> to vector<1x8x8xf32>
    %64 = vector.shape_cast %52 : vector<8x8xf32> to vector<1x8x8xf32>
    %65 = vector.shape_cast %53 : vector<8x8xf32> to vector<1x8x8xf32>
    %66 = vector.shape_cast %54 : vector<8x8xf32> to vector<1x8x8xf32>
    %67 = vector.shape_cast %55 : vector<8x8xf32> to vector<1x8x8xf32>
    %68 = vector.shape_cast %56 : vector<8x8xf32> to vector<1x8x8xf32>
    %69 = vector.shape_cast %57 : vector<8x8xf32> to vector<1x8x8xf32>
    %70 = vector.shape_cast %58 : vector<8x8xf32> to vector<1x8x8xf32>
    %71 = tpu.concatenate %59, %60, %61, %62, %63, %64, %65, %66, %67, %68, %69, %70 in 0 : vector<1x8x8xf32>, vector<1x8x8xf32>, vector<1x8x8xf32>, vector<1x8x8xf32>, vector<1x8x8xf32>, vector<1x8x8xf32>, vector<1x8x8xf32>, vector<1x8x8xf32>, vector<1x8x8xf32>, vector<1x8x8xf32>, vector<1x8x8xf32>, vector<1x8x8xf32> -> vector<12x8x8xf32>
    %72 = vector.extract_strided_slice %71 {offsets = [0, 0, 0], sizes = [4, 8, 8], strides = [1, 1, 1]} : vector<12x8x8xf32> to vector<4x8x8xf32>
    %73 = vector.extract_strided_slice %71 {offsets = [4, 0, 0], sizes = [4, 8, 8], strides = [1, 1, 1]} : vector<12x8x8xf32> to vector<4x8x8xf32>
    %74 = vector.extract_strided_slice %71 {offsets = [8, 0, 0], sizes = [4, 8, 8], strides = [1, 1, 1]} : vector<12x8x8xf32> to vector<4x8x8xf32>
    "tpu.trace_start"() <{level = 10 : i32, message = "hqd,hkd->hqk"}> : () -> ()
    %cst_22 = arith.constant dense<0.000000e+00> : vector<4x8x8xf32>
    %75 = tpu.matmul %72, %73, %cst_22 {dimension_numbers = #tpu.dot_dimension_numbers<[2], [2], [1], [1], [0, 0, 0, 1, 1, 1], [0], [0]>} : vector<4x8x8xf32>, vector<4x8x8xf32>, vector<4x8x8xf32> -> vector<4x8x8xf32>
    "tpu.trace_stop"() : () -> ()
    %76 = vector.shape_cast %8 : vector<8x8xf32> to vector<1x8x8xf32>
    %77 = vector.broadcast %76 : vector<1x8x8xf32> to vector<4x8x8xf32>
    %78 = arith.addf %75, %77 : vector<4x8x8xf32>
    %cst_23 = arith.constant dense<0xFF800000> : vector<4x8xf32>
    %79 = vector.multi_reduction <maximumf>, %78, %cst_23 [2] : vector<4x8x8xf32> to vector<4x8xf32>
    %80 = vector.shape_cast %79 : vector<4x8xf32> to vector<4x8x1xf32>
    %81 = vector.broadcast %80 : vector<4x8x1xf32> to vector<4x8x8xf32>
    %82 = arith.subf %78, %81 : vector<4x8x8xf32>
    %83 = math.exp %82 : vector<4x8x8xf32>
    %cst_24 = arith.constant dense<0.000000e+00> : vector<4x8xf32>
    %84 = vector.multi_reduction <add>, %83, %cst_24 [2] : vector<4x8x8xf32> to vector<4x8xf32>
    %85 = vector.shape_cast %84 : vector<4x8xf32> to vector<4x8x1xf32>
    %86 = tpu.reciprocal %85 {approx = true} : vector<4x8x1xf32> -> vector<4x8x1xf32>
    %87 = vector.broadcast %86 : vector<4x8x1xf32> to vector<4x8x8xf32>
    %88 = arith.mulf %83, %87 : vector<4x8x8xf32>
    "tpu.trace_start"() <{level = 10 : i32, message = "hqk,hkd->hqd"}> : () -> ()
    %cst_25 = arith.constant dense<0.000000e+00> : vector<4x8x8xf32>
    %89 = tpu.matmul %88, %74, %cst_25 {dimension_numbers = #tpu.dot_dimension_numbers<[2], [1], [1], [2], [0, 0, 0, 1, 1, 2], [0], [0]>} : vector<4x8x8xf32>, vector<4x8x8xf32>, vector<4x8x8xf32> -> vector<4x8x8xf32>
    "tpu.trace_stop"() : () -> ()
    %90 = vector.extract_strided_slice %89 {offsets = [0, 0, 0], sizes = [1, 8, 8], strides = [1, 1, 1]} : vector<4x8x8xf32> to vector<1x8x8xf32>
    %91 = vector.shape_cast %90 : vector<1x8x8xf32> to vector<8x8xf32>
    %92 = vector.extract_strided_slice %89 {offsets = [1, 0, 0], sizes = [1, 8, 8], strides = [1, 1, 1]} : vector<4x8x8xf32> to vector<1x8x8xf32>
    %93 = vector.shape_cast %92 : vector<1x8x8xf32> to vector<8x8xf32>
    %94 = vector.extract_strided_slice %89 {offsets = [2, 0, 0], sizes = [1, 8, 8], strides = [1, 1, 1]} : vector<4x8x8xf32> to vector<1x8x8xf32>
    %95 = vector.shape_cast %94 : vector<1x8x8xf32> to vector<8x8xf32>
    %96 = vector.extract_strided_slice %89 {offsets = [3, 0, 0], sizes = [1, 8, 8], strides = [1, 1, 1]} : vector<4x8x8xf32> to vector<1x8x8xf32>
    %97 = vector.shape_cast %96 : vector<1x8x8xf32> to vector<8x8xf32>
    %98 = tpu.concatenate %91, %93, %95, %97 in 1 : vector<8x8xf32>, vector<8x8xf32>, vector<8x8xf32>, vector<8x8xf32> -> vector<8x32xf32>
    %c0_26 = arith.constant 0 : index
    %c0_27 = arith.constant 0 : index
    %c0_28 = arith.constant 0 : index
    %99 = vector.load %arg5[%c0_26, %c0_27, %c0_28] : memref<2x32x32xf32, #tpu.memory_space<vmem>>, vector<1x32x32xf32>
    %100 = vector.shape_cast %99 : vector<1x32x32xf32> to vector<32x32xf32>
    %cst_29 = arith.constant dense<0.000000e+00> : vector<8x32xf32>
    %101 = tpu.matmul %98, %100, %cst_29 {dimension_numbers = #tpu.dot_dimension_numbers<[1], [0], [0], [1], [0, 0, 1, 1], [], []>} : vector<8x32xf32>, vector<32x32xf32>, vector<8x32xf32> -> vector<8x32xf32>
    %102 = vector.broadcast %15 : vector<1x32xf32> to vector<8x32xf32>
    %103 = arith.addf %101, %102 : vector<8x32xf32>
    %104 = arith.addf %1, %103 : vector<8x32xf32>
    %cst_30 = arith.constant dense<0.000000e+00> : vector<8xf32>
    %105 = vector.multi_reduction <add>, %104, %cst_30 [1] : vector<8x32xf32> to vector<8xf32>
    %106 = vector.shape_cast %105 : vector<8xf32> to vector<8x1xf32>
    %cst_31 = arith.constant 3.200000e+01 : f32
    %107 = vector.broadcast %cst_31 : f32 to vector<8x1xf32>
    %108 = arith.divf %106, %107 : vector<8x1xf32>
    %109 = vector.broadcast %108 : vector<8x1xf32> to vector<8x32xf32>
    %110 = arith.subf %104, %109 : vector<8x32xf32>
    %111 = arith.mulf %110, %110 : vector<8x32xf32>
    %cst_32 = arith.constant dense<0.000000e+00> : vector<8xf32>
    %112 = vector.multi_reduction <add>, %111, %cst_32 [1] : vector<8x32xf32> to vector<8xf32>
    %113 = vector.shape_cast %112 : vector<8xf32> to vector<8x1xf32>
    %cst_33 = arith.constant 0.0322580636 : f32
    %114 = vector.broadcast %cst_33 : f32 to vector<8x1xf32>
    %115 = arith.mulf %113, %114 : vector<8x1xf32>
    %116 = math.sqrt %115 : vector<8x1xf32>
    %cst_34 = arith.constant 9.99999997E-7 : f32
    %117 = vector.broadcast %cst_34 : f32 to vector<8x1xf32>
    %118 = arith.addf %116, %117 : vector<8x1xf32>
    %119 = tpu.reciprocal %118 {approx = true} : vector<8x1xf32> -> vector<8x1xf32>
    %120 = vector.broadcast %108 : vector<8x1xf32> to vector<8x32xf32>
    %121 = arith.subf %104, %120 : vector<8x32xf32>
    %122 = vector.broadcast %13 : vector<1x32xf32> to vector<8x32xf32>
    %123 = arith.mulf %122, %121 : vector<8x32xf32>
    %124 = vector.broadcast %119 : vector<8x1xf32> to vector<8x32xf32>
    %125 = arith.mulf %123, %124 : vector<8x32xf32>
    %126 = vector.broadcast %14 : vector<1x32xf32> to vector<8x32xf32>
    %127 = arith.addf %125, %126 : vector<8x32xf32>
    %c0_35 = arith.constant 0 : index
    %c0_36 = arith.constant 0 : index
    %c0_37 = arith.constant 0 : index
    %128 = vector.load %arg6[%c0_35, %c0_36, %c0_37] : memref<2x32x64xf32, #tpu.memory_space<vmem>>, vector<1x32x64xf32>
    %129 = vector.shape_cast %128 : vector<1x32x64xf32> to vector<32x64xf32>
    %cst_38 = arith.constant dense<0.000000e+00> : vector<8x64xf32>
    %130 = tpu.matmul %127, %129, %cst_38 {dimension_numbers = #tpu.dot_dimension_numbers<[1], [0], [0], [1], [0, 0, 1, 1], [], []>} : vector<8x32xf32>, vector<32x64xf32>, vector<8x64xf32> -> vector<8x64xf32>
    %c0_39 = arith.constant 0 : index
    %c0_40 = arith.constant 0 : index
    %c0_41 = arith.constant 0 : index
    %131 = vector.load %arg7[%c0_39, %c0_40, %c0_41] : memref<2x1x64xf32, #tpu.memory_space<vmem>>, vector<1x1x64xf32>
    %132 = vector.shape_cast %131 : vector<1x1x64xf32> to vector<1x64xf32>
    %133 = vector.broadcast %132 : vector<1x64xf32> to vector<8x64xf32>
    %134 = arith.addf %130, %133 : vector<8x64xf32>
    %cst_42 = arith.constant 0.000000e+00 : f32
    %135 = vector.broadcast %cst_42 : f32 to vector<8x64xf32>
    %136 = arith.maximumf %134, %135 : vector<8x64xf32>
    %c0_43 = arith.constant 0 : index
    %c0_44 = arith.constant 0 : index
    %c0_45 = arith.constant 0 : index
    %137 = vector.load %arg8[%c0_43, %c0_44, %c0_45] : memref<2x64x32xf32, #tpu.memory_space<vmem>>, vector<1x64x32xf32>
    %138 = vector.shape_cast %137 : vector<1x64x32xf32> to vector<64x32xf32>
    %cst_46 = arith.constant dense<0.000000e+00> : vector<8x32xf32>
    %139 = tpu.matmul %136, %138, %cst_46 {dimension_numbers = #tpu.dot_dimension_numbers<[1], [0], [0], [1], [0, 0, 1, 1], [], []>} : vector<8x64xf32>, vector<64x32xf32>, vector<8x32xf32> -> vector<8x32xf32>
    %140 = vector.broadcast %16 : vector<1x32xf32> to vector<8x32xf32>
    %141 = arith.addf %139, %140 : vector<8x32xf32>
    %142 = arith.addf %104, %141 : vector<8x32xf32>
    %c1 = arith.constant 1 : index
    %c0_47 = arith.constant 0 : index
    %c0_48 = arith.constant 0 : index
    %143 = vector.load %arg9[%c1, %c0_47, %c0_48] : memref<2x6x32xf32, #tpu.memory_space<vmem>>, vector<1x6x32xf32>
    %144 = vector.shape_cast %143 : vector<1x6x32xf32> to vector<6x32xf32>
    %145 = vector.extract_strided_slice %144 {offsets = [0, 0], sizes = [1, 32], strides = [1, 1]} : vector<6x32xf32> to vector<1x32xf32>
    %146 = vector.extract_strided_slice %144 {offsets = [1, 0], sizes = [1, 32], strides = [1, 1]} : vector<6x32xf32> to vector<1x32xf32>
    %147 = vector.extract_strided_slice %144 {offsets = [2, 0], sizes = [1, 32], strides = [1, 1]} : vector<6x32xf32> to vector<1x32xf32>
    %148 = vector.extract_strided_slice %144 {offsets = [3, 0], sizes = [1, 32], strides = [1, 1]} : vector<6x32xf32> to vector<1x32xf32>
    %149 = vector.extract_strided_slice %144 {offsets = [4, 0], sizes = [1, 32], strides = [1, 1]} : vector<6x32xf32> to vector<1x32xf32>
    %150 = vector.extract_strided_slice %144 {offsets = [5, 0], sizes = [1, 32], strides = [1, 1]} : vector<6x32xf32> to vector<1x32xf32>
    %cst_49 = arith.constant dense<0.000000e+00> : vector<8xf32>
    %151 = vector.multi_reduction <add>, %142, %cst_49 [1] : vector<8x32xf32> to vector<8xf32>
    %152 = vector.shape_cast %151 : vector<8xf32> to vector<8x1xf32>
    %cst_50 = arith.constant 3.200000e+01 : f32
    %153 = vector.broadcast %cst_50 : f32 to vector<8x1xf32>
    %154 = arith.divf %152, %153 : vector<8x1xf32>
    %155 = vector.broadcast %154 : vector<8x1xf32> to vector<8x32xf32>
    %156 = arith.subf %142, %155 : vector<8x32xf32>
    %157 = arith.mulf %156, %156 : vector<8x32xf32>
    %cst_51 = arith.constant dense<0.000000e+00> : vector<8xf32>
    %158 = vector.multi_reduction <add>, %157, %cst_51 [1] : vector<8x32xf32> to vector<8xf32>
    %159 = vector.shape_cast %158 : vector<8xf32> to vector<8x1xf32>
    %cst_52 = arith.constant 0.0322580636 : f32
    %160 = vector.broadcast %cst_52 : f32 to vector<8x1xf32>
    %161 = arith.mulf %159, %160 : vector<8x1xf32>
    %162 = math.sqrt %161 : vector<8x1xf32>
    %cst_53 = arith.constant 9.99999997E-7 : f32
    %163 = vector.broadcast %cst_53 : f32 to vector<8x1xf32>
    %164 = arith.addf %162, %163 : vector<8x1xf32>
    %165 = tpu.reciprocal %164 {approx = true} : vector<8x1xf32> -> vector<8x1xf32>
    %166 = vector.broadcast %154 : vector<8x1xf32> to vector<8x32xf32>
    %167 = arith.subf %142, %166 : vector<8x32xf32>
    %168 = vector.broadcast %145 : vector<1x32xf32> to vector<8x32xf32>
    %169 = arith.mulf %168, %167 : vector<8x32xf32>
    %170 = vector.broadcast %165 : vector<8x1xf32> to vector<8x32xf32>
    %171 = arith.mulf %169, %170 : vector<8x32xf32>
    %172 = vector.broadcast %146 : vector<1x32xf32> to vector<8x32xf32>
    %173 = arith.addf %171, %172 : vector<8x32xf32>
    %c1_54 = arith.constant 1 : index
    %c0_55 = arith.constant 0 : index
    %c0_56 = arith.constant 0 : index
    %174 = vector.load %arg3[%c1_54, %c0_55, %c0_56] : memref<2x32x96xf32, #tpu.memory_space<vmem>>, vector<1x32x96xf32>
    %175 = vector.shape_cast %174 : vector<1x32x96xf32> to vector<32x96xf32>
    %cst_57 = arith.constant dense<0.000000e+00> : vector<8x96xf32>
    %176 = tpu.matmul %173, %175, %cst_57 {dimension_numbers = #tpu.dot_dimension_numbers<[1], [0], [0], [1], [0, 0, 1, 1], [], []>} : vector<8x32xf32>, vector<32x96xf32>, vector<8x96xf32> -> vector<8x96xf32>
    %c1_58 = arith.constant 1 : index
    %c0_59 = arith.constant 0 : index
    %c0_60 = arith.constant 0 : index
    %177 = vector.load %arg4[%c1_58, %c0_59, %c0_60] : memref<2x1x96xf32, #tpu.memory_space<vmem>>, vector<1x1x96xf32>
    %178 = vector.shape_cast %177 : vector<1x1x96xf32> to vector<1x96xf32>
    %179 = vector.broadcast %178 : vector<1x96xf32> to vector<8x96xf32>
    %180 = arith.addf %176, %179 : vector<8x96xf32>
    %181 = vector.extract_strided_slice %180 {offsets = [0, 0], sizes = [8, 8], strides = [1, 1]} : vector<8x96xf32> to vector<8x8xf32>
    %182 = vector.extract_strided_slice %180 {offsets = [0, 8], sizes = [8, 8], strides = [1, 1]} : vector<8x96xf32> to vector<8x8xf32>
    %183 = vector.extract_strided_slice %180 {offsets = [0, 16], sizes = [8, 8], strides = [1, 1]} : vector<8x96xf32> to vector<8x8xf32>
    %184 = vector.extract_strided_slice %180 {offsets = [0, 24], sizes = [8, 8], strides = [1, 1]} : vector<8x96xf32> to vector<8x8xf32>
    %185 = vector.extract_strided_slice %180 {offsets = [0, 32], sizes = [8, 8], strides = [1, 1]} : vector<8x96xf32> to vector<8x8xf32>
    %186 = vector.extract_strided_slice %180 {offsets = [0, 40], sizes = [8, 8], strides = [1, 1]} : vector<8x96xf32> to vector<8x8xf32>
    %187 = vector.extract_strided_slice %180 {offsets = [0, 48], sizes = [8, 8], strides = [1, 1]} : vector<8x96xf32> to vector<8x8xf32>
    %188 = vector.extract_strided_slice %180 {offsets = [0, 56], sizes = [8, 8], strides = [1, 1]} : vector<8x96xf32> to vector<8x8xf32>
    %189 = vector.extract_strided_slice %180 {offsets = [0, 64], sizes = [8, 8], strides = [1, 1]} : vector<8x96xf32> to vector<8x8xf32>
    %190 = vector.extract_strided_slice %180 {offsets = [0, 72], sizes = [8, 8], strides = [1, 1]} : vector<8x96xf32> to vector<8x8xf32>
    %191 = vector.extract_strided_slice %180 {offsets = [0, 80], sizes = [8, 8], strides = [1, 1]} : vector<8x96xf32> to vector<8x8xf32>
    %192 = vector.extract_strided_slice %180 {offsets = [0, 88], sizes = [8, 8], strides = [1, 1]} : vector<8x96xf32> to vector<8x8xf32>
    %193 = vector.shape_cast %181 : vector<8x8xf32> to vector<1x8x8xf32>
    %194 = vector.shape_cast %182 : vector<8x8xf32> to vector<1x8x8xf32>
    %195 = vector.shape_cast %183 : vector<8x8xf32> to vector<1x8x8xf32>
    %196 = vector.shape_cast %184 : vector<8x8xf32> to vector<1x8x8xf32>
    %197 = vector.shape_cast %185 : vector<8x8xf32> to vector<1x8x8xf32>
    %198 = vector.shape_cast %186 : vector<8x8xf32> to vector<1x8x8xf32>
    %199 = vector.shape_cast %187 : vector<8x8xf32> to vector<1x8x8xf32>
    %200 = vector.shape_cast %188 : vector<8x8xf32> to vector<1x8x8xf32>
    %201 = vector.shape_cast %189 : vector<8x8xf32> to vector<1x8x8xf32>
    %202 = vector.shape_cast %190 : vector<8x8xf32> to vector<1x8x8xf32>
    %203 = vector.shape_cast %191 : vector<8x8xf32> to vector<1x8x8xf32>
    %204 = vector.shape_cast %192 : vector<8x8xf32> to vector<1x8x8xf32>
    %205 = tpu.concatenate %193, %194, %195, %196, %197, %198, %199, %200, %201, %202, %203, %204 in 0 : vector<1x8x8xf32>, vector<1x8x8xf32>, vector<1x8x8xf32>, vector<1x8x8xf32>, vector<1x8x8xf32>, vector<1x8x8xf32>, vector<1x8x8xf32>, vector<1x8x8xf32>, vector<1x8x8xf32>, vector<1x8x8xf32>, vector<1x8x8xf32>, vector<1x8x8xf32> -> vector<12x8x8xf32>
    %206 = vector.extract_strided_slice %205 {offsets = [0, 0, 0], sizes = [4, 8, 8], strides = [1, 1, 1]} : vector<12x8x8xf32> to vector<4x8x8xf32>
    %207 = vector.extract_strided_slice %205 {offsets = [4, 0, 0], sizes = [4, 8, 8], strides = [1, 1, 1]} : vector<12x8x8xf32> to vector<4x8x8xf32>
    %208 = vector.extract_strided_slice %205 {offsets = [8, 0, 0], sizes = [4, 8, 8], strides = [1, 1, 1]} : vector<12x8x8xf32> to vector<4x8x8xf32>
    "tpu.trace_start"() <{level = 10 : i32, message = "hqd,hkd->hqk"}> : () -> ()
    %cst_61 = arith.constant dense<0.000000e+00> : vector<4x8x8xf32>
    %209 = tpu.matmul %206, %207, %cst_61 {dimension_numbers = #tpu.dot_dimension_numbers<[2], [2], [1], [1], [0, 0, 0, 1, 1, 1], [0], [0]>} : vector<4x8x8xf32>, vector<4x8x8xf32>, vector<4x8x8xf32> -> vector<4x8x8xf32>
    "tpu.trace_stop"() : () -> ()
    %210 = vector.shape_cast %8 : vector<8x8xf32> to vector<1x8x8xf32>
    %211 = vector.broadcast %210 : vector<1x8x8xf32> to vector<4x8x8xf32>
    %212 = arith.addf %209, %211 : vector<4x8x8xf32>
    %cst_62 = arith.constant dense<0xFF800000> : vector<4x8xf32>
    %213 = vector.multi_reduction <maximumf>, %212, %cst_62 [2] : vector<4x8x8xf32> to vector<4x8xf32>
    %214 = vector.shape_cast %213 : vector<4x8xf32> to vector<4x8x1xf32>
    %215 = vector.broadcast %214 : vector<4x8x1xf32> to vector<4x8x8xf32>
    %216 = arith.subf %212, %215 : vector<4x8x8xf32>
    %217 = math.exp %216 : vector<4x8x8xf32>
    %cst_63 = arith.constant dense<0.000000e+00> : vector<4x8xf32>
    %218 = vector.multi_reduction <add>, %217, %cst_63 [2] : vector<4x8x8xf32> to vector<4x8xf32>
    %219 = vector.shape_cast %218 : vector<4x8xf32> to vector<4x8x1xf32>
    %220 = tpu.reciprocal %219 {approx = true} : vector<4x8x1xf32> -> vector<4x8x1xf32>
    %221 = vector.broadcast %220 : vector<4x8x1xf32> to vector<4x8x8xf32>
    %222 = arith.mulf %217, %221 : vector<4x8x8xf32>
    "tpu.trace_start"() <{level = 10 : i32, message = "hqk,hkd->hqd"}> : () -> ()
    %cst_64 = arith.constant dense<0.000000e+00> : vector<4x8x8xf32>
    %223 = tpu.matmul %222, %208, %cst_64 {dimension_numbers = #tpu.dot_dimension_numbers<[2], [1], [1], [2], [0, 0, 0, 1, 1, 2], [0], [0]>} : vector<4x8x8xf32>, vector<4x8x8xf32>, vector<4x8x8xf32> -> vector<4x8x8xf32>
    "tpu.trace_stop"() : () -> ()
    %224 = vector.extract_strided_slice %223 {offsets = [0, 0, 0], sizes = [1, 8, 8], strides = [1, 1, 1]} : vector<4x8x8xf32> to vector<1x8x8xf32>
    %225 = vector.shape_cast %224 : vector<1x8x8xf32> to vector<8x8xf32>
    %226 = vector.extract_strided_slice %223 {offsets = [1, 0, 0], sizes = [1, 8, 8], strides = [1, 1, 1]} : vector<4x8x8xf32> to vector<1x8x8xf32>
    %227 = vector.shape_cast %226 : vector<1x8x8xf32> to vector<8x8xf32>
    %228 = vector.extract_strided_slice %223 {offsets = [2, 0, 0], sizes = [1, 8, 8], strides = [1, 1, 1]} : vector<4x8x8xf32> to vector<1x8x8xf32>
    %229 = vector.shape_cast %228 : vector<1x8x8xf32> to vector<8x8xf32>
    %230 = vector.extract_strided_slice %223 {offsets = [3, 0, 0], sizes = [1, 8, 8], strides = [1, 1, 1]} : vector<4x8x8xf32> to vector<1x8x8xf32>
    %231 = vector.shape_cast %230 : vector<1x8x8xf32> to vector<8x8xf32>
    %232 = tpu.concatenate %225, %227, %229, %231 in 1 : vector<8x8xf32>, vector<8x8xf32>, vector<8x8xf32>, vector<8x8xf32> -> vector<8x32xf32>
    %c1_65 = arith.constant 1 : index
    %c0_66 = arith.constant 0 : index
    %c0_67 = arith.constant 0 : index
    %233 = vector.load %arg5[%c1_65, %c0_66, %c0_67] : memref<2x32x32xf32, #tpu.memory_space<vmem>>, vector<1x32x32xf32>
    %234 = vector.shape_cast %233 : vector<1x32x32xf32> to vector<32x32xf32>
    %cst_68 = arith.constant dense<0.000000e+00> : vector<8x32xf32>
    %235 = tpu.matmul %232, %234, %cst_68 {dimension_numbers = #tpu.dot_dimension_numbers<[1], [0], [0], [1], [0, 0, 1, 1], [], []>} : vector<8x32xf32>, vector<32x32xf32>, vector<8x32xf32> -> vector<8x32xf32>
    %236 = vector.broadcast %149 : vector<1x32xf32> to vector<8x32xf32>
    %237 = arith.addf %235, %236 : vector<8x32xf32>
    %238 = arith.addf %142, %237 : vector<8x32xf32>
    %cst_69 = arith.constant dense<0.000000e+00> : vector<8xf32>
    %239 = vector.multi_reduction <add>, %238, %cst_69 [1] : vector<8x32xf32> to vector<8xf32>
    %240 = vector.shape_cast %239 : vector<8xf32> to vector<8x1xf32>
    %cst_70 = arith.constant 3.200000e+01 : f32
    %241 = vector.broadcast %cst_70 : f32 to vector<8x1xf32>
    %242 = arith.divf %240, %241 : vector<8x1xf32>
    %243 = vector.broadcast %242 : vector<8x1xf32> to vector<8x32xf32>
    %244 = arith.subf %238, %243 : vector<8x32xf32>
    %245 = arith.mulf %244, %244 : vector<8x32xf32>
    %cst_71 = arith.constant dense<0.000000e+00> : vector<8xf32>
    %246 = vector.multi_reduction <add>, %245, %cst_71 [1] : vector<8x32xf32> to vector<8xf32>
    %247 = vector.shape_cast %246 : vector<8xf32> to vector<8x1xf32>
    %cst_72 = arith.constant 0.0322580636 : f32
    %248 = vector.broadcast %cst_72 : f32 to vector<8x1xf32>
    %249 = arith.mulf %247, %248 : vector<8x1xf32>
    %250 = math.sqrt %249 : vector<8x1xf32>
    %cst_73 = arith.constant 9.99999997E-7 : f32
    %251 = vector.broadcast %cst_73 : f32 to vector<8x1xf32>
    %252 = arith.addf %250, %251 : vector<8x1xf32>
    %253 = tpu.reciprocal %252 {approx = true} : vector<8x1xf32> -> vector<8x1xf32>
    %254 = vector.broadcast %242 : vector<8x1xf32> to vector<8x32xf32>
    %255 = arith.subf %238, %254 : vector<8x32xf32>
    %256 = vector.broadcast %147 : vector<1x32xf32> to vector<8x32xf32>
    %257 = arith.mulf %256, %255 : vector<8x32xf32>
    %258 = vector.broadcast %253 : vector<8x1xf32> to vector<8x32xf32>
    %259 = arith.mulf %257, %258 : vector<8x32xf32>
    %260 = vector.broadcast %148 : vector<1x32xf32> to vector<8x32xf32>
    %261 = arith.addf %259, %260 : vector<8x32xf32>
    %c1_74 = arith.constant 1 : index
    %c0_75 = arith.constant 0 : index
    %c0_76 = arith.constant 0 : index
    %262 = vector.load %arg6[%c1_74, %c0_75, %c0_76] : memref<2x32x64xf32, #tpu.memory_space<vmem>>, vector<1x32x64xf32>
    %263 = vector.shape_cast %262 : vector<1x32x64xf32> to vector<32x64xf32>
    %cst_77 = arith.constant dense<0.000000e+00> : vector<8x64xf32>
    %264 = tpu.matmul %261, %263, %cst_77 {dimension_numbers = #tpu.dot_dimension_numbers<[1], [0], [0], [1], [0, 0, 1, 1], [], []>} : vector<8x32xf32>, vector<32x64xf32>, vector<8x64xf32> -> vector<8x64xf32>
    %c1_78 = arith.constant 1 : index
    %c0_79 = arith.constant 0 : index
    %c0_80 = arith.constant 0 : index
    %265 = vector.load %arg7[%c1_78, %c0_79, %c0_80] : memref<2x1x64xf32, #tpu.memory_space<vmem>>, vector<1x1x64xf32>
    %266 = vector.shape_cast %265 : vector<1x1x64xf32> to vector<1x64xf32>
    %267 = vector.broadcast %266 : vector<1x64xf32> to vector<8x64xf32>
    %268 = arith.addf %264, %267 : vector<8x64xf32>
    %cst_81 = arith.constant 0.000000e+00 : f32
    %269 = vector.broadcast %cst_81 : f32 to vector<8x64xf32>
    %270 = arith.maximumf %268, %269 : vector<8x64xf32>
    %c1_82 = arith.constant 1 : index
    %c0_83 = arith.constant 0 : index
    %c0_84 = arith.constant 0 : index
    %271 = vector.load %arg8[%c1_82, %c0_83, %c0_84] : memref<2x64x32xf32, #tpu.memory_space<vmem>>, vector<1x64x32xf32>
    %272 = vector.shape_cast %271 : vector<1x64x32xf32> to vector<64x32xf32>
    %cst_85 = arith.constant dense<0.000000e+00> : vector<8x32xf32>
    %273 = tpu.matmul %270, %272, %cst_85 {dimension_numbers = #tpu.dot_dimension_numbers<[1], [0], [0], [1], [0, 0, 1, 1], [], []>} : vector<8x64xf32>, vector<64x32xf32>, vector<8x32xf32> -> vector<8x32xf32>
    %274 = vector.broadcast %150 : vector<1x32xf32> to vector<8x32xf32>
    %275 = arith.addf %273, %274 : vector<8x32xf32>
    %276 = arith.addf %238, %275 : vector<8x32xf32>
    %c0_86 = arith.constant 0 : index
    %c0_87 = arith.constant 0 : index
    %c0_88 = arith.constant 0 : index
    %277 = vector.load %arg10[%c0_86, %c0_87, %c0_88] : memref<1x8x32xf32, #tpu.memory_space<vmem>>, vector<1x8x32xf32>
    %278 = vector.shape_cast %277 : vector<1x8x32xf32> to vector<8x32xf32>
    %279 = vector.shape_cast %276 : vector<8x32xf32> to vector<1x8x32xf32>
    tpu.vector_store %arg10[%c0_86, %c0_87, %c0_88], %279 {strides = array<i32>} : memref<1x8x32xf32, #tpu.memory_space<vmem>>, vector<1x8x32xf32>,
    return
  }
  func.func @transform_0(%arg0: i32) -> (i32, i32, i32) {
    %c0_i32 = arith.constant 0 : i32
    %c0_i32_0 = arith.constant 0 : i32
    %c0_i32_1 = arith.constant 0 : i32
    return %arg0, %c0_i32, %c0_i32_0 : i32, i32, i32
  }
  func.func @transform_1(%arg0: i32) -> (i32, i32, i32) {
    %c0_i32 = arith.constant 0 : i32
    %c0_i32_0 = arith.constant 0 : i32
    %c0_i32_1 = arith.constant 0 : i32
    return %arg0, %c0_i32, %c0_i32_0 : i32, i32, i32
  }
  func.func @transform_2(%arg0: i32) -> (i32, i32, i32) {
    %c0_i32 = arith.constant 0 : i32
    %c0_i32_0 = arith.constant 0 : i32
    %c0_i32_1 = arith.constant 0 : i32
    %c0_i32_2 = arith.constant 0 : i32
    return %c0_i32, %c0_i32_0, %c0_i32_1 : i32, i32, i32
  }
  func.func @transform_3(%arg0: i32) -> (i32, i32, i32) {
    %c0_i32 = arith.constant 0 : i32
    %c0_i32_0 = arith.constant 0 : i32
    %c0_i32_1 = arith.constant 0 : i32
    %c0_i32_2 = arith.constant 0 : i32
    return %c0_i32, %c0_i32_0, %c0_i32_1 : i32, i32, i32
  }
  func.func @transform_4(%arg0: i32) -> (i32, i32, i32) {
    %c0_i32 = arith.constant 0 : i32
    %c0_i32_0 = arith.constant 0 : i32
    %c0_i32_1 = arith.constant 0 : i32
    %c0_i32_2 = arith.constant 0 : i32
    return %c0_i32, %c0_i32_0, %c0_i32_1 : i32, i32, i32
  }
  func.func @transform_5(%arg0: i32) -> (i32, i32, i32) {
    %c0_i32 = arith.constant 0 : i32
    %c0_i32_0 = arith.constant 0 : i32
    %c0_i32_1 = arith.constant 0 : i32
    %c0_i32_2 = arith.constant 0 : i32
    return %c0_i32, %c0_i32_0, %c0_i32_1 : i32, i32, i32
  }
  func.func @transform_6(%arg0: i32) -> (i32, i32, i32) {
    %c0_i32 = arith.constant 0 : i32
    %c0_i32_0 = arith.constant 0 : i32
    %c0_i32_1 = arith.constant 0 : i32
    %c0_i32_2 = arith.constant 0 : i32
    return %c0_i32, %c0_i32_0, %c0_i32_1 : i32, i32, i32
  }
  func.func @transform_7(%arg0: i32) -> (i32, i32, i32) {
    %c0_i32 = arith.constant 0 : i32
    %c0_i32_0 = arith.constant 0 : i32
    %c0_i32_1 = arith.constant 0 : i32
    %c0_i32_2 = arith.constant 0 : i32
    return %c0_i32, %c0_i32_0, %c0_i32_1 : i32, i32, i32
  }
  func.func @transform_8(%arg0: i32) -> (i32, i32, i32) {
    %c0_i32 = arith.constant 0 : i32
    %c0_i32_0 = arith.constant 0 : i32
    %c0_i32_1 = arith.constant 0 : i32
    %c0_i32_2 = arith.constant 0 : i32
    return %c0_i32, %c0_i32_0, %c0_i32_1 : i32, i32, i32
  }
  func.func @transform_9(%arg0: i32) -> (i32, i32, i32) {
    %c0_i32 = arith.constant 0 : i32
    %c0_i32_0 = arith.constant 0 : i32
    %c0_i32_1 = arith.constant 0 : i32
    return %arg0, %c0_i32, %c0_i32_0 : i32, i32, i32
  }
}

</mosaic_0001>

<llo_original>
// kernel: tpu_custom_call.1
$region0: #{tpu_custom_call.1}
  #allocation0 [shape = 'u32[]', space=smem, size = 0x4, offset = 0x4, fixed_abs, tag = 'smem constant byte address 0x4 - core index']
  #allocation1 [shape = 'u32[72,128]{1,0:T(1,128)}', space=vmem, size = 0x9000, scoped, tag = 'internal scratch']
  %s0 = inlined_call_operand.vmem [shape: f32[2,8,32], index: 0, kind: input, shape index: {}]
  %s1 = inlined_call_operand.hbm [shape: f32[2,8,8], index: 1, kind: input, shape index: {}]
  %s2 = inlined_call_operand.vmem [shape: f32[2,32,96], index: 2, kind: input, shape index: {}]
  %s3 = inlined_call_operand.vmem [shape: f32[2,1,96], index: 3, kind: input, shape index: {}]
  %s4 = inlined_call_operand.vmem [shape: f32[2,32,32], index: 4, kind: input, shape index: {}]
  %s5 = inlined_call_operand.vmem [shape: f32[2,32,64], index: 5, kind: input, shape index: {}]
  %s6 = inlined_call_operand.vmem [shape: f32[2,1,64], index: 6, kind: input, shape index: {}]
  %s7 = inlined_call_operand.vmem [shape: f32[2,64,32], index: 7, kind: input, shape index: {}]
  %s8 = inlined_call_operand.vmem [shape: f32[2,6,32], index: 8, kind: input, shape index: {}]
  %s9 = inlined_call_operand.hbm [shape: f32[2,8,32], index: 9, kind: output, shape index: {}]
  %s10 = sld [smem:[#allocation0]]
  $region73: #{tpu_custom_call.1} parent=0
    _
  %s12 = ssub.s32 1, %s10
  %s13 = scalar_select 0, %s12, %s10
  $region1: #{tpu_custom_call.1} parent=0
    #allocation2 [shape = 'u8[8192]{0}', space=vmem, size = 0x2000, scoped, tag = 'input window, operand 1']
    #allocation3 [shape = 's32[2]{0}', space=sflag, size = 0x8, scoped, tag = 'scoped memory for tpu_custom_call.1']
    #allocation4 [shape = 's32[2]{0}', space=sflag, size = 0x8, scoped, tag = 'scoped memory for tpu_custom_call.1']
    #allocation5 [shape = 'u8[8192]{0}', space=vmem, size = 0x2000, scoped, tag = 'output window, operand 0']
    %14 = vsyncpa [#allocation3], 0
    %s15 = scalar_lea.sflag [#allocation3], 1
    %16 = vsyncpa %s15, 0
    %17 = vsyncpa [#allocation4], 0
    %s18 = scalar_lea.sflag [#allocation4], 1
    %19 = vsyncpa %s18, 0
    loop: start=0, step=1, limit=4
    $region2: #{tpu_custom_call.1} parent=1 // loop_pre_header
      _
    $region3: #{tpu_custom_call.1} parent=1 // loop_header
      %s21 = sphi 0, %s25
      %p22 = scmp.ge.s32.totalorder %s21, 4
      %s31 = sphi 0, %s33
      %s34 = sphi 0, %s31
      %s35 = sphi 0, %s34
      %s51 = sphi 0, %s35
      %s57 = sphi 0, %s59
      %s60 = sphi 0, %s57
      %s61 = sphi 0, %s60
      %s77 = sphi 0, %s61
      %s81 = sphi 0, %s81
      %s83 = sphi 0, %s81
      %s84 = sphi 0, %s83
      %s98 = sphi 0, %s84
      %s102 = sphi 0, %s102
      %s104 = sphi 0, %s102
      %s105 = sphi 0, %s104
      %s119 = sphi 0, %s105
      %s123 = sphi 0, %s123
      %s125 = sphi 0, %s123
      %s126 = sphi 0, %s125
      %s140 = sphi 0, %s126
      %s144 = sphi 0, %s144
      %s146 = sphi 0, %s144
      %s147 = sphi 0, %s146
      %s161 = sphi 0, %s147
      %s165 = sphi 0, %s165
      %s167 = sphi 0, %s165
      %s168 = sphi 0, %s167
      %s182 = sphi 0, %s168
      %s186 = sphi 0, %s186
      %s188 = sphi 0, %s186
      %s189 = sphi 0, %s188
      %s203 = sphi 0, %s189
      %s207 = sphi 0, %s207
      %s209 = sphi 0, %s207
      %s210 = sphi 0, %s209
      %s224 = sphi 0, %s210
      %s230 = sphi 0, %s232
      %s233 = sphi 0, %s230
      %s234 = sphi 0, %s233
      %s250 = sphi 0, %s234
    $region4: #{tpu_custom_call.1} parent=1 // loop_header_branch
      %24 = sbr.rel (%p22) target = $region8
    $region5: #{tpu_custom_call.1} parent=1 // loop_body
      %s26 = ssub.s32 %s21, 1
      %s27 = ssub.s32 %s21, 2
      %s28 = sadd.s32 %s21, 1
      %s29 = ssub.s32 %s21, %s28
      %p30 = scmp.eq.s32.totalorder %s29, 0
      %s32 = sadd.s32 %s31, 1
      %s33 = scalar_select %p30, %s31, %s32
      %p36 = pneg %p30
      %p37 = scmp.eq.s32.totalorder %s21, 1
      %p38 = por %p36, %p37
      %p39 = scmp.ne.s32.totalorder %s31, %s34
      %p40 = scmp.eq.s32.totalorder %s21, 0
      %p41 = por %p39, %p40
      %p42 = scmp.ne.s32.totalorder %s31, %s34
      %p43 = scmp.eq.s32.totalorder %s26, 1
      %p44 = por %p42, %p43
      %p45 = scmp.ne.s32.totalorder %s34, %s35
      %p46 = scmp.eq.s32.totalorder %s26, 0
      %p47 = por %p45, %p46
      %p48 = scmp.ne.s32.totalorder %s34, %s35
      %p49 = scmp.eq.s32.totalorder %s27, 1
      %p50 = por %p48, %p49
      %p52 = scmp.ne.s32.totalorder %s35, %s51
      %p53 = scmp.eq.s32.totalorder %s27, 0
      %p54 = por %p52, %p53
      %s55 = ssub.s32 %s21, %s28
      %p56 = scmp.eq.s32.totalorder %s55, 0
      %s58 = sadd.s32 %s57, 1
      %s59 = scalar_select %p56, %s57, %s58
      %p62 = pneg %p56
      %p63 = scmp.eq.s32.totalorder %s21, 1
      %p64 = por %p62, %p63
      %p65 = scmp.ne.s32.totalorder %s57, %s60
      %p66 = scmp.eq.s32.totalorder %s21, 0
      %p67 = por %p65, %p66
      %p68 = scmp.ne.s32.totalorder %s57, %s60
      %p69 = scmp.eq.s32.totalorder %s26, 1
      %p70 = por %p68, %p69
      %p71 = scmp.ne.s32.totalorder %s60, %s61
      %p72 = scmp.eq.s32.totalorder %s26, 0
      %p73 = por %p71, %p72
      %p74 = scmp.ne.s32.totalorder %s60, %s61
      %p75 = scmp.eq.s32.totalorder %s27, 1
      %p76 = por %p74, %p75
      %p78 = scmp.ne.s32.totalorder %s61, %s77
      %p79 = scmp.eq.s32.totalorder %s27, 0
      %p80 = por %p78, %p79
      %s82 = sadd.s32 %s81, 1
      %p85 = scmp.eq.s32.totalorder %s21, 1
      %p86 = scmp.ne.s32.totalorder %s81, %s83
      %p87 = scmp.eq.s32.totalorder %s21, 0
      %p88 = por %p86, %p87
      %p89 = scmp.ne.s32.totalorder %s81, %s83
      %p90 = scmp.eq.s32.totalorder %s26, 1
      %p91 = por %p89, %p90
      %p92 = scmp.ne.s32.totalorder %s83, %s84
      %p93 = scmp.eq.s32.totalorder %s26, 0
      %p94 = por %p92, %p93
      %p95 = scmp.ne.s32.totalorder %s83, %s84
      %p96 = scmp.eq.s32.totalorder %s27, 1
      %p97 = por %p95, %p96
      %p99 = scmp.ne.s32.totalorder %s84, %s98
      %p100 = scmp.eq.s32.totalorder %s27, 0
      %p101 = por %p99, %p100
      %s103 = sadd.s32 %s102, 1
      %p106 = scmp.eq.s32.totalorder %s21, 1
      %p107 = scmp.ne.s32.totalorder %s102, %s104
      %p108 = scmp.eq.s32.totalorder %s21, 0
      %p109 = por %p107, %p108
      %p110 = scmp.ne.s32.totalorder %s102, %s104
      %p111 = scmp.eq.s32.totalorder %s26, 1
      %p112 = por %p110, %p111
      %p113 = scmp.ne.s32.totalorder %s104, %s105
      %p114 = scmp.eq.s32.totalorder %s26, 0
      %p115 = por %p113, %p114
      %p116 = scmp.ne.s32.totalorder %s104, %s105
      %p117 = scmp.eq.s32.totalorder %s27, 1
      %p118 = por %p116, %p117
      %p120 = scmp.ne.s32.totalorder %s105, %s119
      %p121 = scmp.eq.s32.totalorder %s27, 0
      %p122 = por %p120, %p121
      %s124 = sadd.s32 %s123, 1
      %p127 = scmp.eq.s32.totalorder %s21, 1
      %p128 = scmp.ne.s32.totalorder %s123, %s125
      %p129 = scmp.eq.s32.totalorder %s21, 0
      %p130 = por %p128, %p129
      %p131 = scmp.ne.s32.totalorder %s123, %s125
      %p132 = scmp.eq.s32.totalorder %s26, 1
      %p133 = por %p131, %p132
      %p134 = scmp.ne.s32.totalorder %s125, %s126
      %p135 = scmp.eq.s32.totalorder %s26, 0
      %p136 = por %p134, %p135
      %p137 = scmp.ne.s32.totalorder %s125, %s126
      %p138 = scmp.eq.s32.totalorder %s27, 1
      %p139 = por %p137, %p138
      %p141 = scmp.ne.s32.totalorder %s126, %s140
      %p142 = scmp.eq.s32.totalorder %s27, 0
      %p143 = por %p141, %p142
      %s145 = sadd.s32 %s144, 1
      %p148 = scmp.eq.s32.totalorder %s21, 1
      %p149 = scmp.ne.s32.totalorder %s144, %s146
      %p150 = scmp.eq.s32.totalorder %s21, 0
      %p151 = por %p149, %p150
      %p152 = scmp.ne.s32.totalorder %s144, %s146
      %p153 = scmp.eq.s32.totalorder %s26, 1
      %p154 = por %p152, %p153
      %p155 = scmp.ne.s32.totalorder %s146, %s147
      %p156 = scmp.eq.s32.totalorder %s26, 0
      %p157 = por %p155, %p156
      %p158 = scmp.ne.s32.totalorder %s146, %s147
      %p159 = scmp.eq.s32.totalorder %s27, 1
      %p160 = por %p158, %p159
      %p162 = scmp.ne.s32.totalorder %s147, %s161
      %p163 = scmp.eq.s32.totalorder %s27, 0
      %p164 = por %p162, %p163
      %s166 = sadd.s32 %s165, 1
      %p169 = scmp.eq.s32.totalorder %s21, 1
      %p170 = scmp.ne.s32.totalorder %s165, %s167
      %p171 = scmp.eq.s32.totalorder %s21, 0
      %p172 = por %p170, %p171
      %p173 = scmp.ne.s32.totalorder %s165, %s167
      %p174 = scmp.eq.s32.totalorder %s26, 1
      %p175 = por %p173, %p174
      %p176 = scmp.ne.s32.totalorder %s167, %s168
      %p177 = scmp.eq.s32.totalorder %s26, 0
      %p178 = por %p176, %p177
      %p179 = scmp.ne.s32.totalorder %s167, %s168
      %p180 = scmp.eq.s32.totalorder %s27, 1
      %p181 = por %p179, %p180
      %p183 = scmp.ne.s32.totalorder %s168, %s182
      %p184 = scmp.eq.s32.totalorder %s27, 0
      %p185 = por %p183, %p184
      %s187 = sadd.s32 %s186, 1
      %p190 = scmp.eq.s32.totalorder %s21, 1
      %p191 = scmp.ne.s32.totalorder %s186, %s188
      %p192 = scmp.eq.s32.totalorder %s21, 0
      %p193 = por %p191, %p192
      %p194 = scmp.ne.s32.totalorder %s186, %s188
      %p195 = scmp.eq.s32.totalorder %s26, 1
      %p196 = por %p194, %p195
      %p197 = scmp.ne.s32.totalorder %s188, %s189
      %p198 = scmp.eq.s32.totalorder %s26, 0
      %p199 = por %p197, %p198
      %p200 = scmp.ne.s32.totalorder %s188, %s189
      %p201 = scmp.eq.s32.totalorder %s27, 1
      %p202 = por %p200, %p201
      %p204 = scmp.ne.s32.totalorder %s189, %s203
      %p205 = scmp.eq.s32.totalorder %s27, 0
      %p206 = por %p204, %p205
      %s208 = sadd.s32 %s207, 1
      %p211 = scmp.eq.s32.totalorder %s21, 1
      %p212 = scmp.ne.s32.totalorder %s207, %s209
      %p213 = scmp.eq.s32.totalorder %s21, 0
      %p214 = por %p212, %p213
      %p215 = scmp.ne.s32.totalorder %s207, %s209
      %p216 = scmp.eq.s32.totalorder %s26, 1
      %p217 = por %p215, %p216
      %p218 = scmp.ne.s32.totalorder %s209, %s210
      %p219 = scmp.eq.s32.totalorder %s26, 0
      %p220 = por %p218, %p219
      %p221 = scmp.ne.s32.totalorder %s209, %s210
      %p222 = scmp.eq.s32.totalorder %s27, 1
      %p223 = por %p221, %p222
      %p225 = scmp.ne.s32.totalorder %s210, %s224
      %p226 = scmp.eq.s32.totalorder %s27, 0
      %p227 = por %p225, %p226
      %s228 = ssub.s32 %s21, %s28
      %p229 = scmp.eq.s32.totalorder %s228, 0
      %s231 = sadd.s32 %s230, 1
      %s232 = scalar_select %p229, %s230, %s231
      %p235 = pneg %p229
      %p236 = scmp.eq.s32.totalorder %s21, 1
      %p237 = por %p235, %p236
      %p238 = scmp.ne.s32.totalorder %s230, %s233
      %p239 = scmp.eq.s32.totalorder %s21, 0
      %p240 = por %p238, %p239
      %p241 = scmp.ne.s32.totalorder %s230, %s233
      %p242 = scmp.eq.s32.totalorder %s26, 1
      %p243 = por %p241, %p242
      %p244 = scmp.ne.s32.totalorder %s233, %s234
      %p245 = scmp.eq.s32.totalorder %s26, 0
      %p246 = por %p244, %p245
      %p247 = scmp.ne.s32.totalorder %s233, %s234
      %p248 = scmp.eq.s32.totalorder %s27, 1
      %p249 = por %p247, %p248
      %p251 = scmp.ne.s32.totalorder %s234, %s250
      %p252 = scmp.eq.s32.totalorder %s27, 0
      %p253 = por %p251, %p252
      %p254 = scmp.le.s32.totalorder 1, %s21
      %p255 = scmp.lt.s32.totalorder %s21, 3
      %p256 = pnand %p254, %p255
      %p257 = pneg %p256
      // Predicated region
      $region9: #{tpu_custom_call.1} parent=5 // pred_check
        _
      $region10: #{tpu_custom_call.1} parent=5 // pred_check_branch
        %259 = sbr.rel (%p256) target = $region12
      $region11: #{tpu_custom_call.1} parent=5 // pred_region
        %s260 = ssub.s32 %s21, 1
        // Predicated region
        $region13: #{tpu_custom_call.1} parent=11 // pred_check
          %p261 = pneg %p94
        $region14: #{tpu_custom_call.1} parent=11 // pred_check_branch
          %263 = sbr.rel (%p261) target = $region16
        $region15: #{tpu_custom_call.1} parent=11 // pred_region
          _
        $region16: #{tpu_custom_call.1} parent=11 // pred_fallthru
          _
        // Predicated region
        $region17: #{tpu_custom_call.1} parent=11 // pred_check
          %p264 = pneg %p115
        $region18: #{tpu_custom_call.1} parent=11 // pred_check_branch
          %266 = sbr.rel (%p264) target = $region20
        $region19: #{tpu_custom_call.1} parent=11 // pred_region
          _
        $region20: #{tpu_custom_call.1} parent=11 // pred_fallthru
          _
        // Predicated region
        $region21: #{tpu_custom_call.1} parent=11 // pred_check
          %p267 = pneg %p136
        $region22: #{tpu_custom_call.1} parent=11 // pred_check_branch
          %269 = sbr.rel (%p267) target = $region24
        $region23: #{tpu_custom_call.1} parent=11 // pred_region
          _
        $region24: #{tpu_custom_call.1} parent=11 // pred_fallthru
          _
        // Predicated region
        $region25: #{tpu_custom_call.1} parent=11 // pred_check
          %p270 = pneg %p157
        $region26: #{tpu_custom_call.1} parent=11 // pred_check_branch
          %272 = sbr.rel (%p270) target = $region28
        $region27: #{tpu_custom_call.1} parent=11 // pred_region
          _
        $region28: #{tpu_custom_call.1} parent=11 // pred_fallthru
          _
        // Predicated region
        $region29: #{tpu_custom_call.1} parent=11 // pred_check
          %p273 = pneg %p178
        $region30: #{tpu_custom_call.1} parent=11 // pred_check_branch
          %275 = sbr.rel (%p273) target = $region32
        $region31: #{tpu_custom_call.1} parent=11 // pred_region
          _
        $region32: #{tpu_custom_call.1} parent=11 // pred_fallthru
          _
        // Predicated region
        $region33: #{tpu_custom_call.1} parent=11 // pred_check
          %p276 = pneg %p199
        $region34: #{tpu_custom_call.1} parent=11 // pred_check_branch
          %278 = sbr.rel (%p276) target = $region36
        $region35: #{tpu_custom_call.1} parent=11 // pred_region
          _
        $region36: #{tpu_custom_call.1} parent=11 // pred_fallthru
          _
        // Predicated region
        $region37: #{tpu_custom_call.1} parent=11 // pred_check
          %p279 = pneg %p220
        $region38: #{tpu_custom_call.1} parent=11 // pred_check_branch
          %281 = sbr.rel (%p279) target = $region40
        $region39: #{tpu_custom_call.1} parent=11 // pred_region
          _
        $region40: #{tpu_custom_call.1} parent=11 // pred_fallthru
          _
      $region12: #{tpu_custom_call.1} parent=5 // pred_fallthru
        _
      %p282 = scmp.lt.s32.totalorder %s21, 2
      // Predicated region
      $region41: #{tpu_custom_call.1} parent=5 // pred_check
        %p283 = pneg %p282
      $region42: #{tpu_custom_call.1} parent=5 // pred_check_branch
        %285 = sbr.rel (%p283) target = $region44
      $region43: #{tpu_custom_call.1} parent=5 // pred_region
        // Predicated region
        $region45: #{tpu_custom_call.1} parent=43 // pred_check
          %p286 = pneg %p41
        $region46: #{tpu_custom_call.1} parent=43 // pred_check_branch
          %288 = sbr.rel (%p286) target = $region48
        $region47: #{tpu_custom_call.1} parent=43 // pred_region
          %p289 = scmp.lt.s32.totalorder %s21, 1
          %s290 = scalar_select %p289, %s21, 1
          %s291 = smul.addr %s290, 8
          %s292 = scalar_lea.vmem %s0, %s291
        $region48: #{tpu_custom_call.1} parent=43 // pred_fallthru
          _
        // Predicated region
        $region49: #{tpu_custom_call.1} parent=43 // pred_check
          %p293 = pneg %p67
        $region50: #{tpu_custom_call.1} parent=43 // pred_check_branch
          %295 = sbr.rel (%p293) target = $region52
        $region51: #{tpu_custom_call.1} parent=43 // pred_region
          %s296 = sand.u32 %s57, 1
          %s297 = scalar_lea.sflag [#allocation3], %s296
          %s298 = sand.u32 %s57, 1
          %s299 = smul.addr %s298, 8
          %s300 = scalar_lea.vmem [#allocation2], %s299
          %302 = vsyncadd %s297, 0
          %s303 = smul.addr %s21, 8
          %s304 = scalar_lea.hbm %s1, %s303
          %s306 = sshll.u32 %s304, 4
          %s307 = int_to_ptr.hbm [resolvable:$true] %s306
          %s308 = sshll.u32 %s300, 4
          %s309 = int_to_ptr.vmem [resolvable:$true] %s308
          %311 = dma.hbm_to_vmem [thread:$0]  %s307, 128, %s309, %s297
        $region52: #{tpu_custom_call.1} parent=43 // pred_fallthru
          _
      $region44: #{tpu_custom_call.1} parent=5 // pred_fallthru
        _
      %p312 = scmp.le.s32.totalorder 1, %s21
      %p313 = scmp.lt.s32.totalorder %s21, 3
      %p314 = pnand %p312, %p313
      %p315 = pneg %p314
      // Predicated region
      $region53: #{tpu_custom_call.1} parent=5 // pred_check
        _
      $region54: #{tpu_custom_call.1} parent=5 // pred_check_branch
        %317 = sbr.rel (%p314) target = $region56
      $region55: #{tpu_custom_call.1} parent=5 // pred_region
        %s318 = ssub.s32 %s21, 1
        %s319 = sand.u32 %s60, 1
        %s320 = scalar_lea.sflag [#allocation3], %s319
        %s321 = sand.u32 %s60, 1
        %s322 = smul.addr %s321, 8
        %s323 = scalar_lea.vmem [#allocation2], %s322
        // Predicated region
        $region57: #{tpu_custom_call.1} parent=55 // pred_check
          %p324 = pneg %p73
        $region58: #{tpu_custom_call.1} parent=55 // pred_check_branch
          %326 = sbr.rel (%p324) target = $region60
        $region59: #{tpu_custom_call.1} parent=55 // pred_region
          %328 = dma.done %s320, 128
        $region60: #{tpu_custom_call.1} parent=55 // pred_fallthru
          _
        %p329 = scmp.lt.s32.totalorder %s26, 1
        %s330 = scalar_select %p329, %s26, 1
        %s331 = smul.addr %s330, 8
        %s332 = scalar_lea.vmem %s0, %s331
        %p333 = pneg %p47
        %p334 = pneg %p44
        %s335 = sand.u32 %s60, 1
        %s336 = scalar_lea.sflag [#allocation3], %s335
        %s337 = sand.u32 %s60, 1
        %s338 = smul.addr %s337, 8
        %s339 = scalar_lea.vmem [#allocation2], %s338
        %p340 = pneg %p73
        %p341 = pneg %p70
        %p342 = pneg %p94
        %p343 = pneg %p91
        %p344 = pneg %p115
        %p345 = pneg %p112
        %p346 = pneg %p136
        %p347 = pneg %p133
        %p348 = pneg %p157
        %p349 = pneg %p154
        %p350 = pneg %p178
        %p351 = pneg %p175
        %p352 = pneg %p199
        %p353 = pneg %p196
        %p354 = pneg %p220
        %p355 = pneg %p217
        %p356 = pneg %p246
        %p357 = pneg %p243
        %s358 = sand.u32 %s233, 1
        %s359 = scalar_lea.sflag [#allocation4], %s358
        %s360 = sand.u32 %s233, 1
        %s361 = smul.addr %s360, 8
        %s362 = scalar_lea.vmem [#allocation5], %s361
        %p363 = scmp.lt.s32.totalorder %s26, 1
        %s364 = scalar_select %p363, %s26, 1
        %s365 = smul.addr %s364, 8
        %s366 = scalar_lea.vmem %s0, %s365
        %v367 = vld [vmem:[%s366] sm:$0xff]
        %v368 = vld [vmem:[%s323] sm:$0xff]
        %vm369 = vcmp.eq.f32.partialorder %v368, 0.0
        %v370 = vsel %vm369, -1e+09, 0.0
        %v371 = vld [vmem:[%s8] sm:$0x3f]
        %vm372 = vcmask 261120
        %v373 = vsel %vm372, %v367, 0.0
        %374 = vadd.xlane.f32.xlu0 %v373
        %v375 = vpop.xlane.xlu0 %374
        %v376 = vrcp.pop 32.0
        %v377 = vmul.f32 32.0, %v376
        %v378 = vsub.f32 1.0, %v377
        %v379 = vmul.f32 %v376, %v378
        %v380 = vadd.f32 %v376, %v379
        %vm381 = vweird.f32 %v376
        %v382 = vsel %vm381, %v376, %v380
        %v383 = vmul.f32 %v375, %v382
        %v384 = vsub.f32 %v367, %v383
        %v385 = vmul.f32 %v384, %v384
        %v386 = vsel %vm372, %v385, 0.0
        %387 = vadd.xlane.f32.xlu0 %v386
        %v388 = vpop.xlane.xlu0 %387
        %v389 = vmul.f32 %v388, 0.032258064
        %v390 = vrsqrt.pop %v389
        %v391 = vmul.f32 %v390, %v389
        %v392 = vmul.f32 %v391, %v390
        %v393 = vmul.f32 0.5, %v392
        %v394 = vsub.f32 1.5, %v393
        %v395 = vmul.f32 %v390, %v394
        %v396 = vmul.f32 %v389, %v395
        %vm397 = vcmp.eq.f32.partialorder %v389, inf
        %v398 = vsel %vm397, %v389, %v396
        %vm399 = vcmp.eq.f32.partialorder %v389, 0.0
        %v400 = vand.u32 %v389, 2147483648
        %v401 = vsel %vm399, %v400, %v398
        %v402 = vadd.f32 %v401, 1e-06
        %v403 = vrcp.pop %v402
        %v404 = vperm.slane %v371, 0
        %v405 = vmul.f32 %v404, %v384
        %v406 = vmul.f32 %v405, %v403
        %v407 = vperm.slane %v371, 1
        %v408 = vadd.f32 %v406, %v407
        %v409 = vld [vmem:[%s2] sm:$0xff]
        %v410 = vld [vmem:[%s2 + $0x8] sm:$0xff]
        %v411 = vld [vmem:[%s2 + $0x10] sm:$0xff]
        %v412 = vld [vmem:[%s2 + $0x18] sm:$0xff]
        %v413 = vld [vmem:[%s3] sm:$0x1]
        %v415 = vperm.slane %v413, 0
        %v418 = vsel %vm372, %v408, 0
        %420 = vmatpush.msra.mxu0 0.0
        %421 = vmatpush.msra.mxu0 0.0
        %422 = vmatpush.msra.mxu0 0.0
        %423 = vmatpush.msra.mxu0 0.0
        %424 = vmatpush.msra.mxu0 0.0
        %425 = vmatpush.msra.mxu0 0.0
        %426 = vmatpush.msra.mxu0 0.0
        %427 = vmatpush.msra.mxu0 0.0
        %428 = vmatpush.msra.mxu0 0.0
        %429 = vmatpush.msra.mxu0 0.0
        %430 = vmatpush.msra.mxu0 0.0
        %431 = vmatpush.msra.mxu0 0.0
        %432 = vmatpush.msra.mxu0 %v412
        %433 = vmatpush.msra.mxu0 %v411
        %434 = vmatpush.msra.mxu0 %v410
        %435 = vmatpush.msra.mxu0 %v409
        %436 = vmatmul.f32.gmra.mxu0 %v418
        %v437 = vpop.f32.mrf.mxu0
        %v438 = vadd.f32 %v415, %v437
        %439 = vdwg.mxu0
        %441 = vrot.lane.b32.xlu0 %v438, 120
        %v442 = vpop.permute.xlu0 %441
        %443 = vrot.lane.b32.xlu0 %v438, 112
        %v444 = vpop.permute.xlu0 %443
        %445 = vrot.lane.b32.xlu0 %v438, 104
        %v446 = vpop.permute.xlu0 %445
        %447 = vrot.lane.b32.xlu0 %v438, 96
        %v448 = vpop.permute.xlu0 %447
        %449 = vrot.lane.b32.xlu0 %v438, 88
        %v450 = vpop.permute.xlu0 %449
        %451 = vrot.lane.b32.xlu0 %v438, 80
        %v452 = vpop.permute.xlu0 %451
        %453 = vrot.lane.b32.xlu0 %v438, 72
        %v454 = vpop.permute.xlu0 %453
        %455 = vrot.lane.b32.xlu0 %v438, 64
        %v456 = vpop.permute.xlu0 %455
        %458 = vrot.lane.b32.xlu0 %v438, 56
        %v459 = vpop.permute.xlu0 %458
        %461 = vrot.lane.b32.xlu0 %v438, 48
        %v462 = vpop.permute.xlu0 %461
        %464 = vrot.lane.b32.xlu0 %v438, 40
        %v465 = vpop.permute.xlu0 %464
        %vm467 = vcmask 64512
        %v468 = vsel %vm467, %v438, 0
        %v470 = vsel %vm467, %v448, 0
        %472 = vmatpush.xpose.msra.mxu0 0.0
        %473 = vmatpush.xpose.msra.mxu0 0.0
        %474 = vmatpush.xpose.msra.mxu0 0.0
        %475 = vmatpush.xpose.msra.mxu0 0.0
        %476 = vmatpush.xpose.msra.mxu0 0.0
        %477 = vmatpush.xpose.msra.mxu0 0.0
        %478 = vmatpush.xpose.msra.mxu0 0.0
        %479 = vmatpush.xpose.msra.mxu0 0.0
        %480 = vmatpush.xpose.msra.mxu0 0.0
        %481 = vmatpush.xpose.msra.mxu0 0.0
        %482 = vmatpush.xpose.msra.mxu0 0.0
        %483 = vmatpush.xpose.msra.mxu0 0.0
        %484 = vmatpush.xpose.msra.mxu0 0.0
        %485 = vmatpush.xpose.msra.mxu0 0.0
        %486 = vmatpush.xpose.msra.mxu0 0.0
        %487 = vmatpush.xpose.msra.mxu0 %v470
        %488 = vmatmul.f32.gmra.mxu0 %v468
        %v489 = vpop.f32.mrf.mxu0
        %v490 = vadd.f32 %v370, %v489
        %491 = vdwg.mxu0
        %v492 = vsel %vm467, %v442, 0
        %v494 = vsel %vm467, %v450, 0
        %496 = vmatpush.xpose.msra.mxu0 0.0
        %497 = vmatpush.xpose.msra.mxu0 0.0
        %498 = vmatpush.xpose.msra.mxu0 0.0
        %499 = vmatpush.xpose.msra.mxu0 0.0
        %500 = vmatpush.xpose.msra.mxu0 0.0
        %501 = vmatpush.xpose.msra.mxu0 0.0
        %502 = vmatpush.xpose.msra.mxu0 0.0
        %503 = vmatpush.xpose.msra.mxu0 0.0
        %504 = vmatpush.xpose.msra.mxu0 0.0
        %505 = vmatpush.xpose.msra.mxu0 0.0
        %506 = vmatpush.xpose.msra.mxu0 0.0
        %507 = vmatpush.xpose.msra.mxu0 0.0
        %508 = vmatpush.xpose.msra.mxu0 0.0
        %509 = vmatpush.xpose.msra.mxu0 0.0
        %510 = vmatpush.xpose.msra.mxu0 0.0
        %511 = vmatpush.xpose.msra.mxu0 %v494
        %512 = vmatmul.f32.gmra.mxu0 %v492
        %v513 = vpop.f32.mrf.mxu0
        %v514 = vadd.f32 %v370, %v513
        %515 = vdwg.mxu0
        %v516 = vsel %vm467, %v444, 0
        %v518 = vsel %vm467, %v452, 0
        %520 = vmatpush.xpose.msra.mxu0 0.0
        %521 = vmatpush.xpose.msra.mxu0 0.0
        %522 = vmatpush.xpose.msra.mxu0 0.0
        %523 = vmatpush.xpose.msra.mxu0 0.0
        %524 = vmatpush.xpose.msra.mxu0 0.0
        %525 = vmatpush.xpose.msra.mxu0 0.0
        %526 = vmatpush.xpose.msra.mxu0 0.0
        %527 = vmatpush.xpose.msra.mxu0 0.0
        %528 = vmatpush.xpose.msra.mxu0 0.0
        %529 = vmatpush.xpose.msra.mxu0 0.0
        %530 = vmatpush.xpose.msra.mxu0 0.0
        %531 = vmatpush.xpose.msra.mxu0 0.0
        %532 = vmatpush.xpose.msra.mxu0 0.0
        %533 = vmatpush.xpose.msra.mxu0 0.0
        %534 = vmatpush.xpose.msra.mxu0 0.0
        %535 = vmatpush.xpose.msra.mxu0 %v518
        %536 = vmatmul.f32.gmra.mxu0 %v516
        %v537 = vpop.f32.mrf.mxu0
        %v538 = vadd.f32 %v370, %v537
        %539 = vdwg.mxu0
        %v540 = vsel %vm467, %v446, 0
        %v542 = vsel %vm467, %v454, 0
        %544 = vmatpush.xpose.msra.mxu0 0.0
        %545 = vmatpush.xpose.msra.mxu0 0.0
        %546 = vmatpush.xpose.msra.mxu0 0.0
        %547 = vmatpush.xpose.msra.mxu0 0.0
        %548 = vmatpush.xpose.msra.mxu0 0.0
        %549 = vmatpush.xpose.msra.mxu0 0.0
        %550 = vmatpush.xpose.msra.mxu0 0.0
        %551 = vmatpush.xpose.msra.mxu0 0.0
        %552 = vmatpush.xpose.msra.mxu0 0.0
        %553 = vmatpush.xpose.msra.mxu0 0.0
        %554 = vmatpush.xpose.msra.mxu0 0.0
        %555 = vmatpush.xpose.msra.mxu0 0.0
        %556 = vmatpush.xpose.msra.mxu0 0.0
        %557 = vmatpush.xpose.msra.mxu0 0.0
        %558 = vmatpush.xpose.msra.mxu0 0.0
        %559 = vmatpush.xpose.msra.mxu0 %v542
        %560 = vmatmul.f32.gmra.mxu0 %v540
        %v561 = vpop.f32.mrf.mxu0
        %v562 = vadd.f32 %v370, %v561
        %563 = vdwg.mxu0
        %v564 = vsel %vm467, %v490, -inf
        %565 = vmax.xlane.f32.xlu0 %v564
        %v566 = vpop.xlane.xlu0 %565
        %v567 = vsel %vm467, %v514, -inf
        %568 = vmax.xlane.f32.xlu0 %v567
        %v569 = vpop.xlane.xlu0 %568
        %v570 = vsel %vm467, %v538, -inf
        %571 = vmax.xlane.f32.xlu0 %v570
        %v572 = vpop.xlane.xlu0 %571
        %v573 = vsel %vm467, %v562, -inf
        %574 = vmax.xlane.f32.xlu0 %v573
        %v575 = vpop.xlane.xlu0 %574
        %v576 = vsub.f32 %v490, %v566
        %v577 = vsub.f32 %v514, %v569
        %v578 = vsub.f32 %v538, %v572
        %v579 = vsub.f32 %v562, %v575
        %v580 = vmul.f32 %v576, 1.442695
        %v581 = vpow.pop %v580
        %v582 = vmul.f32 %v577, 1.442695
        %v583 = vpow.pop %v582
        %v584 = vmul.f32 %v578, 1.442695
        %v585 = vpow.pop %v584
        %v586 = vmul.f32 %v579, 1.442695
        %v587 = vpow.pop %v586
        %v588 = vsel %vm467, %v581, 0.0
        %589 = vadd.xlane.f32.xlu0 %v588
        %v590 = vpop.xlane.xlu0 %589
        %v591 = vsel %vm467, %v583, 0.0
        %592 = vadd.xlane.f32.xlu0 %v591
        %v593 = vpop.xlane.xlu0 %592
        %v594 = vsel %vm467, %v585, 0.0
        %595 = vadd.xlane.f32.xlu0 %v594
        %v596 = vpop.xlane.xlu0 %595
        %v597 = vsel %vm467, %v587, 0.0
        %598 = vadd.xlane.f32.xlu0 %v597
        %v599 = vpop.xlane.xlu0 %598
        %v600 = vrcp.pop %v590
        %v601 = vrcp.pop %v593
        %v602 = vrcp.pop %v596
        %v603 = vrcp.pop %v599
        %v604 = vmul.f32 %v581, %v600
        %v605 = vmul.f32 %v583, %v601
        %v606 = vmul.f32 %v585, %v602
        %v607 = vmul.f32 %v587, %v603
        %v609 = vsel %vm467, %v604, 0
        %611 = vmatpush.msra.mxu0 0.0
        %612 = vmatpush.msra.mxu0 0.0
        %613 = vmatpush.msra.mxu0 0.0
        %614 = vmatpush.msra.mxu0 0.0
        %615 = vmatpush.msra.mxu0 0.0
        %616 = vmatpush.msra.mxu0 0.0
        %617 = vmatpush.msra.mxu0 0.0
        %618 = vmatpush.msra.mxu0 0.0
        %619 = vmatpush.msra.mxu0 0.0
        %620 = vmatpush.msra.mxu0 0.0
        %621 = vmatpush.msra.mxu0 0.0
        %622 = vmatpush.msra.mxu0 0.0
        %623 = vmatpush.msra.mxu0 0.0
        %624 = vmatpush.msra.mxu0 0.0
        %625 = vmatpush.msra.mxu0 0.0
        %626 = vmatpush.msra.mxu0 %v456
        %627 = vmatmul.f32.gmra.mxu0 %v609
        %v628 = vpop.f32.mrf.mxu0
        %v629 = vadd.f32 0.0, %v628
        %630 = vdwg.mxu0
        %v632 = vsel %vm467, %v605, 0
        %634 = vmatpush.msra.mxu0 0.0
        %635 = vmatpush.msra.mxu0 0.0
        %636 = vmatpush.msra.mxu0 0.0
        %637 = vmatpush.msra.mxu0 0.0
        %638 = vmatpush.msra.mxu0 0.0
        %639 = vmatpush.msra.mxu0 0.0
        %640 = vmatpush.msra.mxu0 0.0
        %641 = vmatpush.msra.mxu0 0.0
        %642 = vmatpush.msra.mxu0 0.0
        %643 = vmatpush.msra.mxu0 0.0
        %644 = vmatpush.msra.mxu0 0.0
        %645 = vmatpush.msra.mxu0 0.0
        %646 = vmatpush.msra.mxu0 0.0
        %647 = vmatpush.msra.mxu0 0.0
        %648 = vmatpush.msra.mxu0 0.0
        %649 = vmatpush.msra.mxu0 %v459
        %650 = vmatmul.f32.gmra.mxu0 %v632
        %v651 = vpop.f32.mrf.mxu0
        %v652 = vadd.f32 0.0, %v651
        %653 = vdwg.mxu0
        %v655 = vsel %vm467, %v606, 0
        %657 = vmatpush.msra.mxu0 0.0
        %658 = vmatpush.msra.mxu0 0.0
        %659 = vmatpush.msra.mxu0 0.0
        %660 = vmatpush.msra.mxu0 0.0
        %661 = vmatpush.msra.mxu0 0.0
        %662 = vmatpush.msra.mxu0 0.0
        %663 = vmatpush.msra.mxu0 0.0
        %664 = vmatpush.msra.mxu0 0.0
        %665 = vmatpush.msra.mxu0 0.0
        %666 = vmatpush.msra.mxu0 0.0
        %667 = vmatpush.msra.mxu0 0.0
        %668 = vmatpush.msra.mxu0 0.0
        %669 = vmatpush.msra.mxu0 0.0
        %670 = vmatpush.msra.mxu0 0.0
        %671 = vmatpush.msra.mxu0 0.0
        %672 = vmatpush.msra.mxu0 %v462
        %673 = vmatmul.f32.gmra.mxu0 %v655
        %v674 = vpop.f32.mrf.mxu0
        %v675 = vadd.f32 0.0, %v674
        %676 = vdwg.mxu0
        %v678 = vsel %vm467, %v607, 0
        %680 = vmatpush.msra.mxu0 0.0
        %681 = vmatpush.msra.mxu0 0.0
        %682 = vmatpush.msra.mxu0 0.0
        %683 = vmatpush.msra.mxu0 0.0
        %684 = vmatpush.msra.mxu0 0.0
        %685 = vmatpush.msra.mxu0 0.0
        %686 = vmatpush.msra.mxu0 0.0
        %687 = vmatpush.msra.mxu0 0.0
        %688 = vmatpush.msra.mxu0 0.0
        %689 = vmatpush.msra.mxu0 0.0
        %690 = vmatpush.msra.mxu0 0.0
        %691 = vmatpush.msra.mxu0 0.0
        %692 = vmatpush.msra.mxu0 0.0
        %693 = vmatpush.msra.mxu0 0.0
        %694 = vmatpush.msra.mxu0 0.0
        %695 = vmatpush.msra.mxu0 %v465
        %696 = vmatmul.f32.gmra.mxu0 %v678
        %v697 = vpop.f32.mrf.mxu0
        %v698 = vadd.f32 0.0, %v697
        %699 = vdwg.mxu0
        %701 = vrot.lane.b32.xlu0 %v652, 8
        %v702 = vpop.permute.xlu0 %701
        %705 = vrot.lane.b32.xlu0 %v675, 16
        %v706 = vpop.permute.xlu0 %705
        %709 = vrot.lane.b32.xlu0 %v698, 24
        %v710 = vpop.permute.xlu0 %709
        %v712 = vsel %vm467, %v629, %v702
        %vm713 = vcmask 130048
        %v714 = vsel %vm713, %v712, %v706
        %vm715 = vcmask 195584
        %v716 = vsel %vm715, %v714, %v710
        %v717 = vld [vmem:[%s4] sm:$0xff]
        %v718 = vld [vmem:[%s4 + $0x8] sm:$0xff]
        %v719 = vld [vmem:[%s4 + $0x10] sm:$0xff]
        %v720 = vld [vmem:[%s4 + $0x18] sm:$0xff]
        %v721 = vperm.slane %v371, 4
        %v723 = vsel %vm372, %v716, 0
        %725 = vmatpush.msra.mxu0 0.0
        %726 = vmatpush.msra.mxu0 0.0
        %727 = vmatpush.msra.mxu0 0.0
        %728 = vmatpush.msra.mxu0 0.0
        %729 = vmatpush.msra.mxu0 0.0
        %730 = vmatpush.msra.mxu0 0.0
        %731 = vmatpush.msra.mxu0 0.0
        %732 = vmatpush.msra.mxu0 0.0
        %733 = vmatpush.msra.mxu0 0.0
        %734 = vmatpush.msra.mxu0 0.0
        %735 = vmatpush.msra.mxu0 0.0
        %736 = vmatpush.msra.mxu0 0.0
        %737 = vmatpush.msra.mxu0 %v720
        %738 = vmatpush.msra.mxu0 %v719
        %739 = vmatpush.msra.mxu0 %v718
        %740 = vmatpush.msra.mxu0 %v717
        %741 = vmatmul.f32.gmra.mxu0 %v723
        %v742 = vpop.f32.mrf.mxu0
        %v743 = vadd.f32 %v721, %v742
        %744 = vdwg.mxu0
        %v745 = vadd.f32 %v367, %v743
        %v746 = vsel %vm372, %v745, 0.0
        %747 = vadd.xlane.f32.xlu0 %v746
        %v748 = vpop.xlane.xlu0 %747
        %v749 = vmul.f32 %v748, %v382
        %v750 = vsub.f32 %v745, %v749
        %v751 = vmul.f32 %v750, %v750
        %v752 = vsel %vm372, %v751, 0.0
        %753 = vadd.xlane.f32.xlu0 %v752
        %v754 = vpop.xlane.xlu0 %753
        %v755 = vmul.f32 %v754, 0.032258064
        %v756 = vrsqrt.pop %v755
        %v757 = vmul.f32 %v756, %v755
        %v758 = vmul.f32 %v757, %v756
        %v759 = vmul.f32 0.5, %v758
        %v760 = vsub.f32 1.5, %v759
        %v761 = vmul.f32 %v756, %v760
        %v762 = vmul.f32 %v755, %v761
        %vm763 = vcmp.eq.f32.partialorder %v755, inf
        %v764 = vsel %vm763, %v755, %v762
        %vm765 = vcmp.eq.f32.partialorder %v755, 0.0
        %v766 = vand.u32 %v755, 2147483648
        %v767 = vsel %vm765, %v766, %v764
        %v768 = vadd.f32 %v767, 1e-06
        %v769 = vrcp.pop %v768
        %v770 = vperm.slane %v371, 2
        %v771 = vmul.f32 %v770, %v750
        %v772 = vmul.f32 %v771, %v769
        %v773 = vperm.slane %v371, 3
        %v774 = vadd.f32 %v772, %v773
        %v775 = vld [vmem:[%s5] sm:$0xff]
        %v776 = vld [vmem:[%s5 + $0x8] sm:$0xff]
        %v777 = vld [vmem:[%s5 + $0x10] sm:$0xff]
        %v778 = vld [vmem:[%s5 + $0x18] sm:$0xff]
        %v779 = vld [vmem:[%s6] sm:$0x1]
        %v781 = vperm.slane %v779, 0
        %v784 = vsel %vm372, %v774, 0
        %786 = vmatpush.msra.mxu0 0.0
        %787 = vmatpush.msra.mxu0 0.0
        %788 = vmatpush.msra.mxu0 0.0
        %789 = vmatpush.msra.mxu0 0.0
        %790 = vmatpush.msra.mxu0 0.0
        %791 = vmatpush.msra.mxu0 0.0
        %792 = vmatpush.msra.mxu0 0.0
        %793 = vmatpush.msra.mxu0 0.0
        %794 = vmatpush.msra.mxu0 0.0
        %795 = vmatpush.msra.mxu0 0.0
        %796 = vmatpush.msra.mxu0 0.0
        %797 = vmatpush.msra.mxu0 0.0
        %798 = vmatpush.msra.mxu0 %v778
        %799 = vmatpush.msra.mxu0 %v777
        %800 = vmatpush.msra.mxu0 %v776
        %801 = vmatpush.msra.mxu0 %v775
        %802 = vmatmul.f32.gmra.mxu0 %v784
        %v803 = vpop.f32.mrf.mxu0
        %v804 = vadd.f32 %v781, %v803
        %805 = vdwg.mxu0
        %v806 = vmax.f32 %v804, 0.0
        %v807 = vld [vmem:[%s7] sm:$0xff]
        %v808 = vld [vmem:[%s7 + $0x8] sm:$0xff]
        %v809 = vld [vmem:[%s7 + $0x10] sm:$0xff]
        %v810 = vld [vmem:[%s7 + $0x18] sm:$0xff]
        %v811 = vld [vmem:[%s7 + $0x20] sm:$0xff]
        %v812 = vld [vmem:[%s7 + $0x28] sm:$0xff]
        %v813 = vld [vmem:[%s7 + $0x30] sm:$0xff]
        %v814 = vld [vmem:[%s7 + $0x38] sm:$0xff]
        %v815 = vperm.slane %v371, 5
        %vm816 = vcmask 523264
        %v818 = vsel %vm816, %v806, 0
        %820 = vmatpush.msra.mxu0 0.0
        %821 = vmatpush.msra.mxu0 0.0
        %822 = vmatpush.msra.mxu0 0.0
        %823 = vmatpush.msra.mxu0 0.0
        %824 = vmatpush.msra.mxu0 0.0
        %825 = vmatpush.msra.mxu0 0.0
        %826 = vmatpush.msra.mxu0 0.0
        %827 = vmatpush.msra.mxu0 0.0
        %828 = vmatpush.msra.mxu0 %v814
        %829 = vmatpush.msra.mxu0 %v813
        %830 = vmatpush.msra.mxu0 %v812
        %831 = vmatpush.msra.mxu0 %v811
        %832 = vmatpush.msra.mxu0 %v810
        %833 = vmatpush.msra.mxu0 %v809
        %834 = vmatpush.msra.mxu0 %v808
        %835 = vmatpush.msra.mxu0 %v807
        %836 = vmatmul.f32.gmra.mxu0 %v818
        %v837 = vpop.f32.mrf.mxu0
        %v838 = vadd.f32 %v815, %v837
        %839 = vdwg.mxu0
        %v840 = vadd.f32 %v745, %v838
        %s841 = scalar_lea.vmem %s8, 8
        %v842 = vld [vmem:[%s841] sm:$0x3f]
        %v843 = vsel %vm372, %v840, 0.0
        %844 = vadd.xlane.f32.xlu0 %v843
        %v845 = vpop.xlane.xlu0 %844
        %v846 = vmul.f32 %v845, %v382
        %v847 = vsub.f32 %v840, %v846
        %v848 = vmul.f32 %v847, %v847
        %v849 = vsel %vm372, %v848, 0.0
        %850 = vadd.xlane.f32.xlu0 %v849
        %v851 = vpop.xlane.xlu0 %850
        %v852 = vmul.f32 %v851, 0.032258064
        %v853 = vrsqrt.pop %v852
        %v854 = vmul.f32 %v853, %v852
        %v855 = vmul.f32 %v854, %v853
        %v856 = vmul.f32 0.5, %v855
        %v857 = vsub.f32 1.5, %v856
        %v858 = vmul.f32 %v853, %v857
        %v859 = vmul.f32 %v852, %v858
        %vm860 = vcmp.eq.f32.partialorder %v852, inf
        %v861 = vsel %vm860, %v852, %v859
        %vm862 = vcmp.eq.f32.partialorder %v852, 0.0
        %v863 = vand.u32 %v852, 2147483648
        %v864 = vsel %vm862, %v863, %v861
        %v865 = vadd.f32 %v864, 1e-06
        %v866 = vrcp.pop %v865
        %v867 = vperm.slane %v842, 0
        %v868 = vmul.f32 %v867, %v847
        %v869 = vmul.f32 %v868, %v866
        %v870 = vperm.slane %v842, 1
        %v871 = vadd.f32 %v869, %v870
        %s872 = scalar_lea.vmem %s2, 32
        %v873 = vld [vmem:[%s872] sm:$0xff]
        %v874 = vld [vmem:[%s872 + $0x8] sm:$0xff]
        %v875 = vld [vmem:[%s872 + $0x10] sm:$0xff]
        %v876 = vld [vmem:[%s872 + $0x18] sm:$0xff]
        %s877 = scalar_lea.vmem %s3, 1
        %v878 = vld [vmem:[%s877] sm:$0x1]
        %v880 = vperm.slane %v878, 0
        %v883 = vsel %vm372, %v871, 0
        %885 = vmatpush.msra.mxu0 0.0
        %886 = vmatpush.msra.mxu0 0.0
        %887 = vmatpush.msra.mxu0 0.0
        %888 = vmatpush.msra.mxu0 0.0
        %889 = vmatpush.msra.mxu0 0.0
        %890 = vmatpush.msra.mxu0 0.0
        %891 = vmatpush.msra.mxu0 0.0
        %892 = vmatpush.msra.mxu0 0.0
        %893 = vmatpush.msra.mxu0 0.0
        %894 = vmatpush.msra.mxu0 0.0
        %895 = vmatpush.msra.mxu0 0.0
        %896 = vmatpush.msra.mxu0 0.0
        %897 = vmatpush.msra.mxu0 %v876
        %898 = vmatpush.msra.mxu0 %v875
        %899 = vmatpush.msra.mxu0 %v874
        %900 = vmatpush.msra.mxu0 %v873
        %901 = vmatmul.f32.gmra.mxu0 %v883
        %v902 = vpop.f32.mrf.mxu0
        %v903 = vadd.f32 %v880, %v902
        %904 = vdwg.mxu0
        %906 = vrot.lane.b32.xlu0 %v903, 120
        %v907 = vpop.permute.xlu0 %906
        %908 = vrot.lane.b32.xlu0 %v903, 112
        %v909 = vpop.permute.xlu0 %908
        %910 = vrot.lane.b32.xlu0 %v903, 104
        %v911 = vpop.permute.xlu0 %910
        %912 = vrot.lane.b32.xlu0 %v903, 96
        %v913 = vpop.permute.xlu0 %912
        %914 = vrot.lane.b32.xlu0 %v903, 88
        %v915 = vpop.permute.xlu0 %914
        %916 = vrot.lane.b32.xlu0 %v903, 80
        %v917 = vpop.permute.xlu0 %916
        %918 = vrot.lane.b32.xlu0 %v903, 72
        %v919 = vpop.permute.xlu0 %918
        %920 = vrot.lane.b32.xlu0 %v903, 64
        %v921 = vpop.permute.xlu0 %920
        %923 = vrot.lane.b32.xlu0 %v903, 56
        %v924 = vpop.permute.xlu0 %923
        %926 = vrot.lane.b32.xlu0 %v903, 48
        %v927 = vpop.permute.xlu0 %926
        %929 = vrot.lane.b32.xlu0 %v903, 40
        %v930 = vpop.permute.xlu0 %929
        %v932 = vsel %vm467, %v903, 0
        %v934 = vsel %vm467, %v913, 0
        %936 = vmatpush.xpose.msra.mxu0 0.0
        %937 = vmatpush.xpose.msra.mxu0 0.0
        %938 = vmatpush.xpose.msra.mxu0 0.0
        %939 = vmatpush.xpose.msra.mxu0 0.0
        %940 = vmatpush.xpose.msra.mxu0 0.0
        %941 = vmatpush.xpose.msra.mxu0 0.0
        %942 = vmatpush.xpose.msra.mxu0 0.0
        %943 = vmatpush.xpose.msra.mxu0 0.0
        %944 = vmatpush.xpose.msra.mxu0 0.0
        %945 = vmatpush.xpose.msra.mxu0 0.0
        %946 = vmatpush.xpose.msra.mxu0 0.0
        %947 = vmatpush.xpose.msra.mxu0 0.0
        %948 = vmatpush.xpose.msra.mxu0 0.0
        %949 = vmatpush.xpose.msra.mxu0 0.0
        %950 = vmatpush.xpose.msra.mxu0 0.0
        %951 = vmatpush.xpose.msra.mxu0 %v934
        %952 = vmatmul.f32.gmra.mxu0 %v932
        %v953 = vpop.f32.mrf.mxu0
        %v954 = vadd.f32 %v370, %v953
        %955 = vdwg.mxu0
        %v956 = vsel %vm467, %v907, 0
        %v958 = vsel %vm467, %v915, 0
        %960 = vmatpush.xpose.msra.mxu0 0.0
        %961 = vmatpush.xpose.msra.mxu0 0.0
        %962 = vmatpush.xpose.msra.mxu0 0.0
        %963 = vmatpush.xpose.msra.mxu0 0.0
        %964 = vmatpush.xpose.msra.mxu0 0.0
        %965 = vmatpush.xpose.msra.mxu0 0.0
        %966 = vmatpush.xpose.msra.mxu0 0.0
        %967 = vmatpush.xpose.msra.mxu0 0.0
        %968 = vmatpush.xpose.msra.mxu0 0.0
        %969 = vmatpush.xpose.msra.mxu0 0.0
        %970 = vmatpush.xpose.msra.mxu0 0.0
        %971 = vmatpush.xpose.msra.mxu0 0.0
        %972 = vmatpush.xpose.msra.mxu0 0.0
        %973 = vmatpush.xpose.msra.mxu0 0.0
        %974 = vmatpush.xpose.msra.mxu0 0.0
        %975 = vmatpush.xpose.msra.mxu0 %v958
        %976 = vmatmul.f32.gmra.mxu0 %v956
        %v977 = vpop.f32.mrf.mxu0
        %v978 = vadd.f32 %v370, %v977
        %979 = vdwg.mxu0
        %v980 = vsel %vm467, %v909, 0
        %v982 = vsel %vm467, %v917, 0
        %984 = vmatpush.xpose.msra.mxu0 0.0
        %985 = vmatpush.xpose.msra.mxu0 0.0
        %986 = vmatpush.xpose.msra.mxu0 0.0
        %987 = vmatpush.xpose.msra.mxu0 0.0
        %988 = vmatpush.xpose.msra.mxu0 0.0
        %989 = vmatpush.xpose.msra.mxu0 0.0
        %990 = vmatpush.xpose.msra.mxu0 0.0
        %991 = vmatpush.xpose.msra.mxu0 0.0
        %992 = vmatpush.xpose.msra.mxu0 0.0
        %993 = vmatpush.xpose.msra.mxu0 0.0
        %994 = vmatpush.xpose.msra.mxu0 0.0
        %995 = vmatpush.xpose.msra.mxu0 0.0
        %996 = vmatpush.xpose.msra.mxu0 0.0
        %997 = vmatpush.xpose.msra.mxu0 0.0
        %998 = vmatpush.xpose.msra.mxu0 0.0
        %999 = vmatpush.xpose.msra.mxu0 %v982
        %1000 = vmatmul.f32.gmra.mxu0 %v980
        %v1001 = vpop.f32.mrf.mxu0
        %v1002 = vadd.f32 %v370, %v1001
        %1003 = vdwg.mxu0
        %v1004 = vsel %vm467, %v911, 0
        %v1006 = vsel %vm467, %v919, 0
        %1008 = vmatpush.xpose.msra.mxu0 0.0
        %1009 = vmatpush.xpose.msra.mxu0 0.0
        %1010 = vmatpush.xpose.msra.mxu0 0.0
        %1011 = vmatpush.xpose.msra.mxu0 0.0
        %1012 = vmatpush.xpose.msra.mxu0 0.0
        %1013 = vmatpush.xpose.msra.mxu0 0.0
        %1014 = vmatpush.xpose.msra.mxu0 0.0
        %1015 = vmatpush.xpose.msra.mxu0 0.0
        %1016 = vmatpush.xpose.msra.mxu0 0.0
        %1017 = vmatpush.xpose.msra.mxu0 0.0
        %1018 = vmatpush.xpose.msra.mxu0 0.0
        %1019 = vmatpush.xpose.msra.mxu0 0.0
        %1020 = vmatpush.xpose.msra.mxu0 0.0
        %1021 = vmatpush.xpose.msra.mxu0 0.0
        %1022 = vmatpush.xpose.msra.mxu0 0.0
        %1023 = vmatpush.xpose.msra.mxu0 %v1006
        %1024 = vmatmul.f32.gmra.mxu0 %v1004
        %v1025 = vpop.f32.mrf.mxu0
        %v1026 = vadd.f32 %v370, %v1025
        %1027 = vdwg.mxu0
        %v1028 = vsel %vm467, %v954, -inf
        %1029 = vmax.xlane.f32.xlu0 %v1028
        %v1030 = vpop.xlane.xlu0 %1029
        %v1031 = vsel %vm467, %v978, -inf
        %1032 = vmax.xlane.f32.xlu0 %v1031
        %v1033 = vpop.xlane.xlu0 %1032
        %v1034 = vsel %vm467, %v1002, -inf
        %1035 = vmax.xlane.f32.xlu0 %v1034
        %v1036 = vpop.xlane.xlu0 %1035
        %v1037 = vsel %vm467, %v1026, -inf
        %1038 = vmax.xlane.f32.xlu0 %v1037
        %v1039 = vpop.xlane.xlu0 %1038
        %v1040 = vsub.f32 %v954, %v1030
        %v1041 = vsub.f32 %v978, %v1033
        %v1042 = vsub.f32 %v1002, %v1036
        %v1043 = vsub.f32 %v1026, %v1039
        %v1044 = vmul.f32 %v1040, 1.442695
        %v1045 = vpow.pop %v1044
        %v1046 = vmul.f32 %v1041, 1.442695
        %v1047 = vpow.pop %v1046
        %v1048 = vmul.f32 %v1042, 1.442695
        %v1049 = vpow.pop %v1048
        %v1050 = vmul.f32 %v1043, 1.442695
        %v1051 = vpow.pop %v1050
        %v1052 = vsel %vm467, %v1045, 0.0
        %1053 = vadd.xlane.f32.xlu0 %v1052
        %v1054 = vpop.xlane.xlu0 %1053
        %v1055 = vsel %vm467, %v1047, 0.0
        %1056 = vadd.xlane.f32.xlu0 %v1055
        %v1057 = vpop.xlane.xlu0 %1056
        %v1058 = vsel %vm467, %v1049, 0.0
        %1059 = vadd.xlane.f32.xlu0 %v1058
        %v1060 = vpop.xlane.xlu0 %1059
        %v1061 = vsel %vm467, %v1051, 0.0
        %1062 = vadd.xlane.f32.xlu0 %v1061
        %v1063 = vpop.xlane.xlu0 %1062
        %v1064 = vrcp.pop %v1054
        %v1065 = vrcp.pop %v1057
        %v1066 = vrcp.pop %v1060
        %v1067 = vrcp.pop %v1063
        %v1068 = vmul.f32 %v1045, %v1064
        %v1069 = vmul.f32 %v1047, %v1065
        %v1070 = vmul.f32 %v1049, %v1066
        %v1071 = vmul.f32 %v1051, %v1067
        %v1073 = vsel %vm467, %v1068, 0
        %1075 = vmatpush.msra.mxu0 0.0
        %1076 = vmatpush.msra.mxu0 0.0
        %1077 = vmatpush.msra.mxu0 0.0
        %1078 = vmatpush.msra.mxu0 0.0
        %1079 = vmatpush.msra.mxu0 0.0
        %1080 = vmatpush.msra.mxu0 0.0
        %1081 = vmatpush.msra.mxu0 0.0
        %1082 = vmatpush.msra.mxu0 0.0
        %1083 = vmatpush.msra.mxu0 0.0
        %1084 = vmatpush.msra.mxu0 0.0
        %1085 = vmatpush.msra.mxu0 0.0
        %1086 = vmatpush.msra.mxu0 0.0
        %1087 = vmatpush.msra.mxu0 0.0
        %1088 = vmatpush.msra.mxu0 0.0
        %1089 = vmatpush.msra.mxu0 0.0
        %1090 = vmatpush.msra.mxu0 %v921
        %1091 = vmatmul.f32.gmra.mxu0 %v1073
        %v1092 = vpop.f32.mrf.mxu0
        %v1093 = vadd.f32 0.0, %v1092
        %1094 = vdwg.mxu0
        %v1096 = vsel %vm467, %v1069, 0
        %1098 = vmatpush.msra.mxu0 0.0
        %1099 = vmatpush.msra.mxu0 0.0
        %1100 = vmatpush.msra.mxu0 0.0
        %1101 = vmatpush.msra.mxu0 0.0
        %1102 = vmatpush.msra.mxu0 0.0
        %1103 = vmatpush.msra.mxu0 0.0
        %1104 = vmatpush.msra.mxu0 0.0
        %1105 = vmatpush.msra.mxu0 0.0
        %1106 = vmatpush.msra.mxu0 0.0
        %1107 = vmatpush.msra.mxu0 0.0
        %1108 = vmatpush.msra.mxu0 0.0
        %1109 = vmatpush.msra.mxu0 0.0
        %1110 = vmatpush.msra.mxu0 0.0
        %1111 = vmatpush.msra.mxu0 0.0
        %1112 = vmatpush.msra.mxu0 0.0
        %1113 = vmatpush.msra.mxu0 %v924
        %1114 = vmatmul.f32.gmra.mxu0 %v1096
        %v1115 = vpop.f32.mrf.mxu0
        %v1116 = vadd.f32 0.0, %v1115
        %1117 = vdwg.mxu0
        %v1119 = vsel %vm467, %v1070, 0
        %1121 = vmatpush.msra.mxu0 0.0
        %1122 = vmatpush.msra.mxu0 0.0
        %1123 = vmatpush.msra.mxu0 0.0
        %1124 = vmatpush.msra.mxu0 0.0
        %1125 = vmatpush.msra.mxu0 0.0
        %1126 = vmatpush.msra.mxu0 0.0
        %1127 = vmatpush.msra.mxu0 0.0
        %1128 = vmatpush.msra.mxu0 0.0
        %1129 = vmatpush.msra.mxu0 0.0
        %1130 = vmatpush.msra.mxu0 0.0
        %1131 = vmatpush.msra.mxu0 0.0
        %1132 = vmatpush.msra.mxu0 0.0
        %1133 = vmatpush.msra.mxu0 0.0
        %1134 = vmatpush.msra.mxu0 0.0
        %1135 = vmatpush.msra.mxu0 0.0
        %1136 = vmatpush.msra.mxu0 %v927
        %1137 = vmatmul.f32.gmra.mxu0 %v1119
        %v1138 = vpop.f32.mrf.mxu0
        %v1139 = vadd.f32 0.0, %v1138
        %1140 = vdwg.mxu0
        %v1142 = vsel %vm467, %v1071, 0
        %1144 = vmatpush.msra.mxu0 0.0
        %1145 = vmatpush.msra.mxu0 0.0
        %1146 = vmatpush.msra.mxu0 0.0
        %1147 = vmatpush.msra.mxu0 0.0
        %1148 = vmatpush.msra.mxu0 0.0
        %1149 = vmatpush.msra.mxu0 0.0
        %1150 = vmatpush.msra.mxu0 0.0
        %1151 = vmatpush.msra.mxu0 0.0
        %1152 = vmatpush.msra.mxu0 0.0
        %1153 = vmatpush.msra.mxu0 0.0
        %1154 = vmatpush.msra.mxu0 0.0
        %1155 = vmatpush.msra.mxu0 0.0
        %1156 = vmatpush.msra.mxu0 0.0
        %1157 = vmatpush.msra.mxu0 0.0
        %1158 = vmatpush.msra.mxu0 0.0
        %1159 = vmatpush.msra.mxu0 %v930
        %1160 = vmatmul.f32.gmra.mxu0 %v1142
        %v1161 = vpop.f32.mrf.mxu0
        %v1162 = vadd.f32 0.0, %v1161
        %1163 = vdwg.mxu0
        %1165 = vrot.lane.b32.xlu0 %v1116, 8
        %v1166 = vpop.permute.xlu0 %1165
        %1169 = vrot.lane.b32.xlu0 %v1139, 16
        %v1170 = vpop.permute.xlu0 %1169
        %1173 = vrot.lane.b32.xlu0 %v1162, 24
        %v1174 = vpop.permute.xlu0 %1173
        %v1176 = vsel %vm467, %v1093, %v1166
        %v1177 = vsel %vm713, %v1176, %v1170
        %v1178 = vsel %vm715, %v1177, %v1174
        %s1179 = scalar_lea.vmem %s4, 32
        %v1180 = vld [vmem:[%s1179] sm:$0xff]
        %v1181 = vld [vmem:[%s1179 + $0x8] sm:$0xff]
        %v1182 = vld [vmem:[%s1179 + $0x10] sm:$0xff]
        %v1183 = vld [vmem:[%s1179 + $0x18] sm:$0xff]
        %v1184 = vperm.slane %v842, 4
        %v1186 = vsel %vm372, %v1178, 0
        %1188 = vmatpush.msra.mxu0 0.0
        %1189 = vmatpush.msra.mxu0 0.0
        %1190 = vmatpush.msra.mxu0 0.0
        %1191 = vmatpush.msra.mxu0 0.0
        %1192 = vmatpush.msra.mxu0 0.0
        %1193 = vmatpush.msra.mxu0 0.0
        %1194 = vmatpush.msra.mxu0 0.0
        %1195 = vmatpush.msra.mxu0 0.0
        %1196 = vmatpush.msra.mxu0 0.0
        %1197 = vmatpush.msra.mxu0 0.0
        %1198 = vmatpush.msra.mxu0 0.0
        %1199 = vmatpush.msra.mxu0 0.0
        %1200 = vmatpush.msra.mxu0 %v1183
        %1201 = vmatpush.msra.mxu0 %v1182
        %1202 = vmatpush.msra.mxu0 %v1181
        %1203 = vmatpush.msra.mxu0 %v1180
        %1204 = vmatmul.f32.gmra.mxu0 %v1186
        %v1205 = vpop.f32.mrf.mxu0
        %v1206 = vadd.f32 %v1184, %v1205
        %1207 = vdwg.mxu0
        %v1208 = vadd.f32 %v840, %v1206
        %v1209 = vsel %vm372, %v1208, 0.0
        %1210 = vadd.xlane.f32.xlu0 %v1209
        %v1211 = vpop.xlane.xlu0 %1210
        %v1212 = vmul.f32 %v1211, %v382
        %v1213 = vsub.f32 %v1208, %v1212
        %v1214 = vmul.f32 %v1213, %v1213
        %v1215 = vsel %vm372, %v1214, 0.0
        %1216 = vadd.xlane.f32.xlu0 %v1215
        %v1217 = vpop.xlane.xlu0 %1216
        %v1218 = vmul.f32 %v1217, 0.032258064
        %v1219 = vrsqrt.pop %v1218
        %v1220 = vmul.f32 %v1219, %v1218
        %v1221 = vmul.f32 %v1220, %v1219
        %v1222 = vmul.f32 0.5, %v1221
        %v1223 = vsub.f32 1.5, %v1222
        %v1224 = vmul.f32 %v1219, %v1223
        %v1225 = vmul.f32 %v1218, %v1224
        %vm1226 = vcmp.eq.f32.partialorder %v1218, inf
        %v1227 = vsel %vm1226, %v1218, %v1225
        %vm1228 = vcmp.eq.f32.partialorder %v1218, 0.0
        %v1229 = vand.u32 %v1218, 2147483648
        %v1230 = vsel %vm1228, %v1229, %v1227
        %v1231 = vadd.f32 %v1230, 1e-06
        %v1232 = vrcp.pop %v1231
        %v1233 = vperm.slane %v842, 2
        %v1234 = vmul.f32 %v1233, %v1213
        %v1235 = vmul.f32 %v1234, %v1232
        %v1236 = vperm.slane %v842, 3
        %v1237 = vadd.f32 %v1235, %v1236
        %s1238 = scalar_lea.vmem %s5, 32
        %v1239 = vld [vmem:[%s1238] sm:$0xff]
        %v1240 = vld [vmem:[%s1238 + $0x8] sm:$0xff]
        %v1241 = vld [vmem:[%s1238 + $0x10] sm:$0xff]
        %v1242 = vld [vmem:[%s1238 + $0x18] sm:$0xff]
        %s1243 = scalar_lea.vmem %s6, 1
        %v1244 = vld [vmem:[%s1243] sm:$0x1]
        %v1246 = vperm.slane %v1244, 0
        %v1249 = vsel %vm372, %v1237, 0
        %1251 = vmatpush.msra.mxu0 0.0
        %1252 = vmatpush.msra.mxu0 0.0
        %1253 = vmatpush.msra.mxu0 0.0
        %1254 = vmatpush.msra.mxu0 0.0
        %1255 = vmatpush.msra.mxu0 0.0
        %1256 = vmatpush.msra.mxu0 0.0
        %1257 = vmatpush.msra.mxu0 0.0
        %1258 = vmatpush.msra.mxu0 0.0
        %1259 = vmatpush.msra.mxu0 0.0
        %1260 = vmatpush.msra.mxu0 0.0
        %1261 = vmatpush.msra.mxu0 0.0
        %1262 = vmatpush.msra.mxu0 0.0
        %1263 = vmatpush.msra.mxu0 %v1242
        %1264 = vmatpush.msra.mxu0 %v1241
        %1265 = vmatpush.msra.mxu0 %v1240
        %1266 = vmatpush.msra.mxu0 %v1239
        %1267 = vmatmul.f32.gmra.mxu0 %v1249
        %v1268 = vpop.f32.mrf.mxu0
        %v1269 = vadd.f32 %v1246, %v1268
        %1270 = vdwg.mxu0
        %v1271 = vmax.f32 %v1269, 0.0
        %s1272 = scalar_lea.vmem %s7, 64
        %v1273 = vld [vmem:[%s1272] sm:$0xff]
        %v1274 = vld [vmem:[%s1272 + $0x8] sm:$0xff]
        %v1275 = vld [vmem:[%s1272 + $0x10] sm:$0xff]
        %v1276 = vld [vmem:[%s1272 + $0x18] sm:$0xff]
        %v1277 = vld [vmem:[%s1272 + $0x20] sm:$0xff]
        %v1278 = vld [vmem:[%s1272 + $0x28] sm:$0xff]
        %v1279 = vld [vmem:[%s1272 + $0x30] sm:$0xff]
        %v1280 = vld [vmem:[%s1272 + $0x38] sm:$0xff]
        %v1281 = vperm.slane %v842, 5
        %v1283 = vsel %vm816, %v1271, 0
        %1285 = vmatpush.msra.mxu0 0.0
        %1286 = vmatpush.msra.mxu0 0.0
        %1287 = vmatpush.msra.mxu0 0.0
        %1288 = vmatpush.msra.mxu0 0.0
        %1289 = vmatpush.msra.mxu0 0.0
        %1290 = vmatpush.msra.mxu0 0.0
        %1291 = vmatpush.msra.mxu0 0.0
        %1292 = vmatpush.msra.mxu0 0.0
        %1293 = vmatpush.msra.mxu0 %v1280
        %1294 = vmatpush.msra.mxu0 %v1279
        %1295 = vmatpush.msra.mxu0 %v1278
        %1296 = vmatpush.msra.mxu0 %v1277
        %1297 = vmatpush.msra.mxu0 %v1276
        %1298 = vmatpush.msra.mxu0 %v1275
        %1299 = vmatpush.msra.mxu0 %v1274
        %1300 = vmatpush.msra.mxu0 %v1273
        %1301 = vmatmul.f32.gmra.mxu0 %v1283
        %v1302 = vpop.f32.mrf.mxu0
        %v1303 = vadd.f32 %v1281, %v1302
        %1304 = vdwg.mxu0
        %v1305 = vadd.f32 %v1208, %v1303
        %1306 = vst.msk [vmem:[%s362] sm:$0xff] %vm372, %v1305
        %s1307 = sand.u32 %s233, 1
        %s1308 = scalar_lea.sflag [#allocation4], %s1307
        %s1309 = sand.u32 %s233, 1
        %s1310 = smul.addr %s1309, 8
        %s1311 = scalar_lea.vmem [#allocation5], %s1310
        // Predicated region
        $region61: #{tpu_custom_call.1} parent=55 // pred_check
          %p1312 = pneg %p243
        $region62: #{tpu_custom_call.1} parent=55 // pred_check_branch
          %1314 = sbr.rel (%p1312) target = $region64
        $region63: #{tpu_custom_call.1} parent=55 // pred_region
          %1316 = vsyncadd %s1308, 0
          %s1317 = smul.addr %s26, 8
          %s1318 = scalar_lea.hbm %s9, %s1317
          %s1320 = sshll.u32 %s1311, 4
          %s1321 = int_to_ptr.vmem [resolvable:$true] %s1320
          %s1322 = sshll.u32 %s1318, 4
          %s1323 = int_to_ptr.hbm [resolvable:$true] %s1322
          %1325 = dma.vmem_to_hbm [thread:$0]  %s1321, 128, %s1323, %s1308
        $region64: #{tpu_custom_call.1} parent=55 // pred_fallthru
          _
      $region56: #{tpu_custom_call.1} parent=5 // pred_fallthru
        _
      %p1326 = scmp.le.s32.totalorder 2, %s21
      // Predicated region
      $region65: #{tpu_custom_call.1} parent=5 // pred_check
        %p1327 = pneg %p1326
      $region66: #{tpu_custom_call.1} parent=5 // pred_check_branch
        %1329 = sbr.rel (%p1327) target = $region68
      $region67: #{tpu_custom_call.1} parent=5 // pred_region
        %s1330 = ssub.s32 %s21, 2
        // Predicated region
        $region69: #{tpu_custom_call.1} parent=67 // pred_check
          %p1331 = pneg %p249
        $region70: #{tpu_custom_call.1} parent=67 // pred_check_branch
          %1333 = sbr.rel (%p1331) target = $region72
        $region71: #{tpu_custom_call.1} parent=67 // pred_region
          %s1334 = sand.u32 %s234, 1
          %s1335 = scalar_lea.sflag [#allocation4], %s1334
          %s1336 = sand.u32 %s234, 1
          %s1337 = smul.addr %s1336, 8
          %s1338 = scalar_lea.vmem [#allocation5], %s1337
          %1340 = dma.done %s1335, 128
        $region72: #{tpu_custom_call.1} parent=67 // pred_fallthru
          _
      $region68: #{tpu_custom_call.1} parent=5 // pred_fallthru
        _
    $region6: #{tpu_custom_call.1} parent=1 // loop_footer
      %s25 = sadd.s32 1, %s21
    $region7: #{tpu_custom_call.1} parent=1 // loop_footer_branch
      %20 = sbr.rel target = $region3
    $region8: #{tpu_custom_call.1} parent=1 // loop_exit
      _
    %1341 = vsyncpa [#allocation3], 1
    %s1342 = scalar_lea.sflag [#allocation3], 1
    %1343 = vsyncpa %s1342, 1
    %1344 = vsyncpa [#allocation4], 1
    %s1345 = scalar_lea.sflag [#allocation4], 1
    %1346 = vsyncpa %s1345, 1

</llo_original>
